<compile_context>
chip_gen: v7x
topology: tpu7x:2x2x1
jax: 0.10.0
libtpu: 0.0.40
codegen_flags: <defaults>
</compile_context>

<pallas_src>
import functools

import jax
import jax.numpy as jnp
from jax import lax
from jax.experimental import pallas as pl
from jax.experimental.pallas import tpu as pltpu

_CHUNK = 1024          # one f32 vreg of batch: 8 sublanes x 128 lanes
_NUM_SQUARINGS = 6     # A = T * 2^-6, then 6 squarings
# Taylor degree 4 (Paterson-Stockmeyer): X = A + A^2/2 + A^2 @ (A/6 + A^2/24)


def _transop_expm_kernel(psi_ref, c_ref, x_ref, out_ref, *, M, N, D):
    # psi_ref: (M*N*N,) f32 in SMEM (scalar reads, free broadcast into VPU ops)
    # c_ref  : (M,   R, 128) f32    (R = tile_b // 128 batch rows)
    # x_ref  : (N*D, R, 128) f32
    # out_ref: (N*D, R, 128) f32
    R = c_ref.shape[1]
    n_chunks = R // 8
    scale = jnp.float32(1.0 / (2.0 ** _NUM_SQUARINGS))

    def bmm(a, b):
        # (N,N) grids of (8,128) planes: out[i][j] = sum_k a[i][k] * b[k][j]
        # -> pure full-density vreg FMAs, no broadcasts, no XLU.
        o = [[None] * N for _ in range(N)]
        for i in range(N):
            for j in range(N):
                acc = a[i][0] * b[0][j]
                for k in range(1, N):
                    acc = acc + a[i][k] * b[k][j]
                o[i][j] = acc
        return o

    def chunk_body(ci, carry):
        r0 = pl.multiple_of(ci * 8, 8)

        # Coefficients for this 1024-sample chunk: one dense plane per m.
        c_pl = [c_ref[m, pl.ds(r0, 8), :] for m in range(M)]

        # A[i][j] = (sum_m psi[m,i,j] * c_m) * 2^-s   (scalar * vector FMAs).
        A = [[None] * N for _ in range(N)]
        for i in range(N):
            for j in range(N):
                acc = psi_ref[i * N + j] * c_pl[0]
                for m in range(1, M):
                    acc = acc + psi_ref[m * N * N + i * N + j] * c_pl[m]
                A[i][j] = acc * scale

        # X = expm(A) - I ~= A + A^2/2 + A^3/6 + A^4/24  (2 bmms, no identity).
        A2 = bmm(A, A)
        W = [[A[i][j] * (1.0 / 6.0) + A2[i][j] * (1.0 / 24.0)
              for j in range(N)] for i in range(N)]
        A2W = bmm(A2, W)
        X = [[A[i][j] + 0.5 * A2[i][j] + A2W[i][j]
              for j in range(N)] for i in range(N)]

        # Squaring: (I + X)^2 = I + (2X + X^2)  ->  X <- 2X + X^2.
        for _ in range(_NUM_SQUARINGS):
            X2 = bmm(X, X)
            X = [[2.0 * X[i][j] + X2[i][j] for j in range(N)] for i in range(N)]

        # out[i,d] = x[i,d] + sum_j X[i][j] * x[j,d]   ( == expm(T) @ x ).
        for d in range(D):
            xp = [x_ref[j * D + d, pl.ds(r0, 8), :] for j in range(N)]
            for i in range(N):
                o = xp[i]
                for j in range(N):
                    o = o + X[i][j] * xp[j]
                out_ref[i * D + d, pl.ds(r0, 8), :] = o
        return carry

    lax.fori_loop(0, n_chunks, chunk_body, 0)


def transop_expm(psi, c, x, tile_b=4096):
    """psi: (M, N, N), c: (B, M), x: (B, N, D) -> expm(sum_m c_m psi_m) @ x."""
    B, N, D = x.shape
    M = psi.shape[0]

    # tile_b samples per grid step, processed as tile_b/1024 in-kernel chunks.
    tile_b = max(_CHUNK, (int(tile_b) // _CHUNK) * _CHUNK)
    n_chunks = pl.cdiv(B, _CHUNK)
    chunks_per_step = min(tile_b // _CHUNK, n_chunks)
    if n_chunks >= 2:
        # Ensure >= 2 grid steps so the "parallel" axis spans both v7x TCs.
        chunks_per_step = min(chunks_per_step, pl.cdiv(n_chunks, 2))
    tile_b = chunks_per_step * _CHUNK
    steps = pl.cdiv(n_chunks, chunks_per_step)
    Bp = steps * tile_b
    rows = tile_b // 128

    # Lane-major repack: batch -> trailing (Bp//128, 128) dims (dense vregs).
    # Zero-padded batch columns give T=0 -> X=0 -> zero outputs (sliced off).
    # TODO(synk): callers keeping activations resident in this layout across
    # calls can skip these wrapper transposes / pads (extra HBM passes).
    c_pad = jnp.pad(c.astype(jnp.float32), ((0, Bp - B), (0, 0)))            # (Bp, M)
    x_pad = jnp.pad(x.astype(jnp.float32), ((0, Bp - B), (0, 0), (0, 0)))    # (Bp, N, D)
    c_l = c_pad.T.reshape(M, Bp // 128, 128)
    x_l = jnp.transpose(x_pad, (1, 2, 0)).reshape(N * D, Bp // 128, 128)
    psi_flat = psi.astype(jnp.float32).reshape(M * N * N)

    out_l = pl.pallas_call(
        functools.partial(_transop_expm_kernel, M=M, N=N, D=D),
        out_shape=jax.ShapeDtypeStruct((N * D, Bp // 128, 128), jnp.float32),
        grid=(steps,),
        in_specs=[
            pl.BlockSpec(memory_space=pltpu.MemorySpace.SMEM),        # psi (54 scalars)
            pl.BlockSpec((M, rows, 128), lambda g: (0, g, 0)),        # c batch tile
            pl.BlockSpec((N * D, rows, 128), lambda g: (0, g, 0)),    # x batch tile
        ],
        out_specs=pl.BlockSpec((N * D, rows, 128), lambda g: (0, g, 0)),
        compiler_params=pltpu.CompilerParams(dimension_semantics=("parallel",)),
    )(psi_flat, c_l, x_l)

    out = jnp.transpose(out_l.reshape(N, D, Bp), (2, 0, 1))[:B]              # (B, N, D)
    return out.astype(x.dtype)


def init_psi(key, M, N, var=0.1):
    # Matches TransOp_expm.__init__: psi = randn(M, N, N) * var, each psi[m]
    # normalized by its Frobenius norm.
    psi = jax.random.normal(key, (M, N, N), jnp.float32) * var
    norms = jnp.linalg.norm(psi.reshape(M, -1), axis=1)
    return psi / norms[:, None, None]


def _reference(psi, c, x):
    T = jnp.einsum("bm,mij->bij", c, psi)
    expT = jax.vmap(jax.scipy.linalg.expm)(T)
    return jnp.einsum("bij,bjd->bid", expT, x)


if __name__ == "__main__":
    M, N, var = 6, 3, 0.1
    key = jax.random.PRNGKey(0)
    k_psi, k_c, k_x = jax.random.split(key, 3)
    psi = init_psi(k_psi, M, N, var)                          # "parameters"

    # Small demo batch, D=1: single grid step, one (mostly padded) chunk.
    B, D = 4, 1
    c = jax.random.normal(k_c, (B, M), jnp.float32) * 0.5     # set_coefficients(c)
    x = jax.random.normal(k_x, (B, N, D), jnp.float32)
    out = jax.block_until_ready(transop_expm(psi, c, x))
    ref = _reference(psi, c, x)
    assert jnp.allclose(out, ref, atol=1e-4, rtol=1e-4), (out, ref)

    # Larger batch with D>1: multi-chunk inner loop, 2-step grid (megacore
    # path on v7x) and batch padding / partially filled last tile.
    B2, D2 = 2100, 2
    c2 = jax.random.normal(k_c, (B2, M), jnp.float32) * 0.5
    x2 = jax.random.normal(k_x, (B2, N, D2), jnp.float32)
    out2 = jax.block_until_ready(transop_expm(psi, c2, x2, tile_b=2048))
    ref2 = _reference(psi, c2, x2)
    assert jnp.allclose(out2, ref2, atol=1e-4, rtol=1e-4)

    print("KERNEL_OK")
</pallas_src>

<mosaic_0001>
module attributes {stable_mosaic.version = 11 : i64} {
  func.func @_transop_expm_kernel(%arg0: i32, %arg1: memref<54xf32, #tpu.memory_space<smem>>, %arg2: memref<6x8x128xf32, #tpu.memory_space<vmem>>, %arg3: memref<3x8x128xf32, #tpu.memory_space<vmem>>, %arg4: memref<3x8x128xf32, #tpu.memory_space<vmem>>) attributes {dimension_semantics = [#tpu.dimension_semantics<parallel>], iteration_bounds = array<i64: 1>, scalar_prefetch = 0 : i64, scratch_operands = 0 : i64, tpu.core_type = #tpu.core_type<tc>, window_params = [{transform_indices = @transform_0, window_bounds = array<i64: 54>}, {transform_indices = @transform_1, window_bounds = array<i64: 6, 8, 128>}, {transform_indices = @transform_2, window_bounds = array<i64: 3, 8, 128>}, {transform_indices = @transform_3, window_bounds = array<i64: 3, 8, 128>}]} {
    %cst = arith.constant 1.562500e-02 : f32
    %c0_i32 = arith.constant 0 : i32
    %c8_i32 = arith.constant 8 : i32
    %0 = arith.muli %c0_i32, %c8_i32 : i32
    %1 = tpu.assume_multiple %0, 8 : i32
    %c0 = arith.constant 0 : index
    %2 = arith.index_cast %1 : i32 to index
    %c0_0 = arith.constant 0 : index
    %3 = vector.load %arg2[%c0, %2, %c0_0] : memref<6x8x128xf32, #tpu.memory_space<vmem>>, vector<1x8x128xf32>
    %4 = vector.shape_cast %3 : vector<1x8x128xf32> to vector<8x128xf32>
    %c1 = arith.constant 1 : index
    %5 = arith.index_cast %1 : i32 to index
    %c0_1 = arith.constant 0 : index
    %6 = vector.load %arg2[%c1, %5, %c0_1] : memref<6x8x128xf32, #tpu.memory_space<vmem>>, vector<1x8x128xf32>
    %7 = vector.shape_cast %6 : vector<1x8x128xf32> to vector<8x128xf32>
    %c2 = arith.constant 2 : index
    %8 = arith.index_cast %1 : i32 to index
    %c0_2 = arith.constant 0 : index
    %9 = vector.load %arg2[%c2, %8, %c0_2] : memref<6x8x128xf32, #tpu.memory_space<vmem>>, vector<1x8x128xf32>
    %10 = vector.shape_cast %9 : vector<1x8x128xf32> to vector<8x128xf32>
    %c3 = arith.constant 3 : index
    %11 = arith.index_cast %1 : i32 to index
    %c0_3 = arith.constant 0 : index
    %12 = vector.load %arg2[%c3, %11, %c0_3] : memref<6x8x128xf32, #tpu.memory_space<vmem>>, vector<1x8x128xf32>
    %13 = vector.shape_cast %12 : vector<1x8x128xf32> to vector<8x128xf32>
    %c4 = arith.constant 4 : index
    %14 = arith.index_cast %1 : i32 to index
    %c0_4 = arith.constant 0 : index
    %15 = vector.load %arg2[%c4, %14, %c0_4] : memref<6x8x128xf32, #tpu.memory_space<vmem>>, vector<1x8x128xf32>
    %16 = vector.shape_cast %15 : vector<1x8x128xf32> to vector<8x128xf32>
    %c5 = arith.constant 5 : index
    %17 = arith.index_cast %1 : i32 to index
    %c0_5 = arith.constant 0 : index
    %18 = vector.load %arg2[%c5, %17, %c0_5] : memref<6x8x128xf32, #tpu.memory_space<vmem>>, vector<1x8x128xf32>
    %19 = vector.shape_cast %18 : vector<1x8x128xf32> to vector<8x128xf32>
    %c0_6 = arith.constant 0 : index
    %20 = memref.load %arg1[%c0_6] : memref<54xf32, #tpu.memory_space<smem>>
    %21 = vector.broadcast %20 : f32 to vector<8x128xf32>
    %22 = arith.mulf %21, %4 : vector<8x128xf32>
    %c9 = arith.constant 9 : index
    %23 = memref.load %arg1[%c9] : memref<54xf32, #tpu.memory_space<smem>>
    %24 = vector.broadcast %23 : f32 to vector<8x128xf32>
    %25 = arith.mulf %24, %7 : vector<8x128xf32>
    %26 = arith.addf %22, %25 : vector<8x128xf32>
    %c18 = arith.constant 18 : index
    %27 = memref.load %arg1[%c18] : memref<54xf32, #tpu.memory_space<smem>>
    %28 = vector.broadcast %27 : f32 to vector<8x128xf32>
    %29 = arith.mulf %28, %10 : vector<8x128xf32>
    %30 = arith.addf %26, %29 : vector<8x128xf32>
    %c27 = arith.constant 27 : index
    %31 = memref.load %arg1[%c27] : memref<54xf32, #tpu.memory_space<smem>>
    %32 = vector.broadcast %31 : f32 to vector<8x128xf32>
    %33 = arith.mulf %32, %13 : vector<8x128xf32>
    %34 = arith.addf %30, %33 : vector<8x128xf32>
    %c36 = arith.constant 36 : index
    %35 = memref.load %arg1[%c36] : memref<54xf32, #tpu.memory_space<smem>>
    %36 = vector.broadcast %35 : f32 to vector<8x128xf32>
    %37 = arith.mulf %36, %16 : vector<8x128xf32>
    %38 = arith.addf %34, %37 : vector<8x128xf32>
    %c45 = arith.constant 45 : index
    %39 = memref.load %arg1[%c45] : memref<54xf32, #tpu.memory_space<smem>>
    %40 = vector.broadcast %39 : f32 to vector<8x128xf32>
    %41 = arith.mulf %40, %19 : vector<8x128xf32>
    %42 = arith.addf %38, %41 : vector<8x128xf32>
    %43 = vector.broadcast %cst : f32 to vector<8x128xf32>
    %44 = arith.mulf %42, %43 : vector<8x128xf32>
    %c1_7 = arith.constant 1 : index
    %45 = memref.load %arg1[%c1_7] : memref<54xf32, #tpu.memory_space<smem>>
    %46 = vector.broadcast %45 : f32 to vector<8x128xf32>
    %47 = arith.mulf %46, %4 : vector<8x128xf32>
    %c10 = arith.constant 10 : index
    %48 = memref.load %arg1[%c10] : memref<54xf32, #tpu.memory_space<smem>>
    %49 = vector.broadcast %48 : f32 to vector<8x128xf32>
    %50 = arith.mulf %49, %7 : vector<8x128xf32>
    %51 = arith.addf %47, %50 : vector<8x128xf32>
    %c19 = arith.constant 19 : index
    %52 = memref.load %arg1[%c19] : memref<54xf32, #tpu.memory_space<smem>>
    %53 = vector.broadcast %52 : f32 to vector<8x128xf32>
    %54 = arith.mulf %53, %10 : vector<8x128xf32>
    %55 = arith.addf %51, %54 : vector<8x128xf32>
    %c28 = arith.constant 28 : index
    %56 = memref.load %arg1[%c28] : memref<54xf32, #tpu.memory_space<smem>>
    %57 = vector.broadcast %56 : f32 to vector<8x128xf32>
    %58 = arith.mulf %57, %13 : vector<8x128xf32>
    %59 = arith.addf %55, %58 : vector<8x128xf32>
    %c37 = arith.constant 37 : index
    %60 = memref.load %arg1[%c37] : memref<54xf32, #tpu.memory_space<smem>>
    %61 = vector.broadcast %60 : f32 to vector<8x128xf32>
    %62 = arith.mulf %61, %16 : vector<8x128xf32>
    %63 = arith.addf %59, %62 : vector<8x128xf32>
    %c46 = arith.constant 46 : index
    %64 = memref.load %arg1[%c46] : memref<54xf32, #tpu.memory_space<smem>>
    %65 = vector.broadcast %64 : f32 to vector<8x128xf32>
    %66 = arith.mulf %65, %19 : vector<8x128xf32>
    %67 = arith.addf %63, %66 : vector<8x128xf32>
    %68 = vector.broadcast %cst : f32 to vector<8x128xf32>
    %69 = arith.mulf %67, %68 : vector<8x128xf32>
    %c2_8 = arith.constant 2 : index
    %70 = memref.load %arg1[%c2_8] : memref<54xf32, #tpu.memory_space<smem>>
    %71 = vector.broadcast %70 : f32 to vector<8x128xf32>
    %72 = arith.mulf %71, %4 : vector<8x128xf32>
    %c11 = arith.constant 11 : index
    %73 = memref.load %arg1[%c11] : memref<54xf32, #tpu.memory_space<smem>>
    %74 = vector.broadcast %73 : f32 to vector<8x128xf32>
    %75 = arith.mulf %74, %7 : vector<8x128xf32>
    %76 = arith.addf %72, %75 : vector<8x128xf32>
    %c20 = arith.constant 20 : index
    %77 = memref.load %arg1[%c20] : memref<54xf32, #tpu.memory_space<smem>>
    %78 = vector.broadcast %77 : f32 to vector<8x128xf32>
    %79 = arith.mulf %78, %10 : vector<8x128xf32>
    %80 = arith.addf %76, %79 : vector<8x128xf32>
    %c29 = arith.constant 29 : index
    %81 = memref.load %arg1[%c29] : memref<54xf32, #tpu.memory_space<smem>>
    %82 = vector.broadcast %81 : f32 to vector<8x128xf32>
    %83 = arith.mulf %82, %13 : vector<8x128xf32>
    %84 = arith.addf %80, %83 : vector<8x128xf32>
    %c38 = arith.constant 38 : index
    %85 = memref.load %arg1[%c38] : memref<54xf32, #tpu.memory_space<smem>>
    %86 = vector.broadcast %85 : f32 to vector<8x128xf32>
    %87 = arith.mulf %86, %16 : vector<8x128xf32>
    %88 = arith.addf %84, %87 : vector<8x128xf32>
    %c47 = arith.constant 47 : index
    %89 = memref.load %arg1[%c47] : memref<54xf32, #tpu.memory_space<smem>>
    %90 = vector.broadcast %89 : f32 to vector<8x128xf32>
    %91 = arith.mulf %90, %19 : vector<8x128xf32>
    %92 = arith.addf %88, %91 : vector<8x128xf32>
    %93 = vector.broadcast %cst : f32 to vector<8x128xf32>
    %94 = arith.mulf %92, %93 : vector<8x128xf32>
    %c3_9 = arith.constant 3 : index
    %95 = memref.load %arg1[%c3_9] : memref<54xf32, #tpu.memory_space<smem>>
    %96 = vector.broadcast %95 : f32 to vector<8x128xf32>
    %97 = arith.mulf %96, %4 : vector<8x128xf32>
    %c12 = arith.constant 12 : index
    %98 = memref.load %arg1[%c12] : memref<54xf32, #tpu.memory_space<smem>>
    %99 = vector.broadcast %98 : f32 to vector<8x128xf32>
    %100 = arith.mulf %99, %7 : vector<8x128xf32>
    %101 = arith.addf %97, %100 : vector<8x128xf32>
    %c21 = arith.constant 21 : index
    %102 = memref.load %arg1[%c21] : memref<54xf32, #tpu.memory_space<smem>>
    %103 = vector.broadcast %102 : f32 to vector<8x128xf32>
    %104 = arith.mulf %103, %10 : vector<8x128xf32>
    %105 = arith.addf %101, %104 : vector<8x128xf32>
    %c30 = arith.constant 30 : index
    %106 = memref.load %arg1[%c30] : memref<54xf32, #tpu.memory_space<smem>>
    %107 = vector.broadcast %106 : f32 to vector<8x128xf32>
    %108 = arith.mulf %107, %13 : vector<8x128xf32>
    %109 = arith.addf %105, %108 : vector<8x128xf32>
    %c39 = arith.constant 39 : index
    %110 = memref.load %arg1[%c39] : memref<54xf32, #tpu.memory_space<smem>>
    %111 = vector.broadcast %110 : f32 to vector<8x128xf32>
    %112 = arith.mulf %111, %16 : vector<8x128xf32>
    %113 = arith.addf %109, %112 : vector<8x128xf32>
    %c48 = arith.constant 48 : index
    %114 = memref.load %arg1[%c48] : memref<54xf32, #tpu.memory_space<smem>>
    %115 = vector.broadcast %114 : f32 to vector<8x128xf32>
    %116 = arith.mulf %115, %19 : vector<8x128xf32>
    %117 = arith.addf %113, %116 : vector<8x128xf32>
    %118 = vector.broadcast %cst : f32 to vector<8x128xf32>
    %119 = arith.mulf %117, %118 : vector<8x128xf32>
    %c4_10 = arith.constant 4 : index
    %120 = memref.load %arg1[%c4_10] : memref<54xf32, #tpu.memory_space<smem>>
    %121 = vector.broadcast %120 : f32 to vector<8x128xf32>
    %122 = arith.mulf %121, %4 : vector<8x128xf32>
    %c13 = arith.constant 13 : index
    %123 = memref.load %arg1[%c13] : memref<54xf32, #tpu.memory_space<smem>>
    %124 = vector.broadcast %123 : f32 to vector<8x128xf32>
    %125 = arith.mulf %124, %7 : vector<8x128xf32>
    %126 = arith.addf %122, %125 : vector<8x128xf32>
    %c22 = arith.constant 22 : index
    %127 = memref.load %arg1[%c22] : memref<54xf32, #tpu.memory_space<smem>>
    %128 = vector.broadcast %127 : f32 to vector<8x128xf32>
    %129 = arith.mulf %128, %10 : vector<8x128xf32>
    %130 = arith.addf %126, %129 : vector<8x128xf32>
    %c31 = arith.constant 31 : index
    %131 = memref.load %arg1[%c31] : memref<54xf32, #tpu.memory_space<smem>>
    %132 = vector.broadcast %131 : f32 to vector<8x128xf32>
    %133 = arith.mulf %132, %13 : vector<8x128xf32>
    %134 = arith.addf %130, %133 : vector<8x128xf32>
    %c40 = arith.constant 40 : index
    %135 = memref.load %arg1[%c40] : memref<54xf32, #tpu.memory_space<smem>>
    %136 = vector.broadcast %135 : f32 to vector<8x128xf32>
    %137 = arith.mulf %136, %16 : vector<8x128xf32>
    %138 = arith.addf %134, %137 : vector<8x128xf32>
    %c49 = arith.constant 49 : index
    %139 = memref.load %arg1[%c49] : memref<54xf32, #tpu.memory_space<smem>>
    %140 = vector.broadcast %139 : f32 to vector<8x128xf32>
    %141 = arith.mulf %140, %19 : vector<8x128xf32>
    %142 = arith.addf %138, %141 : vector<8x128xf32>
    %143 = vector.broadcast %cst : f32 to vector<8x128xf32>
    %144 = arith.mulf %142, %143 : vector<8x128xf32>
    %c5_11 = arith.constant 5 : index
    %145 = memref.load %arg1[%c5_11] : memref<54xf32, #tpu.memory_space<smem>>
    %146 = vector.broadcast %145 : f32 to vector<8x128xf32>
    %147 = arith.mulf %146, %4 : vector<8x128xf32>
    %c14 = arith.constant 14 : index
    %148 = memref.load %arg1[%c14] : memref<54xf32, #tpu.memory_space<smem>>
    %149 = vector.broadcast %148 : f32 to vector<8x128xf32>
    %150 = arith.mulf %149, %7 : vector<8x128xf32>
    %151 = arith.addf %147, %150 : vector<8x128xf32>
    %c23 = arith.constant 23 : index
    %152 = memref.load %arg1[%c23] : memref<54xf32, #tpu.memory_space<smem>>
    %153 = vector.broadcast %152 : f32 to vector<8x128xf32>
    %154 = arith.mulf %153, %10 : vector<8x128xf32>
    %155 = arith.addf %151, %154 : vector<8x128xf32>
    %c32 = arith.constant 32 : index
    %156 = memref.load %arg1[%c32] : memref<54xf32, #tpu.memory_space<smem>>
    %157 = vector.broadcast %156 : f32 to vector<8x128xf32>
    %158 = arith.mulf %157, %13 : vector<8x128xf32>
    %159 = arith.addf %155, %158 : vector<8x128xf32>
    %c41 = arith.constant 41 : index
    %160 = memref.load %arg1[%c41] : memref<54xf32, #tpu.memory_space<smem>>
    %161 = vector.broadcast %160 : f32 to vector<8x128xf32>
    %162 = arith.mulf %161, %16 : vector<8x128xf32>
    %163 = arith.addf %159, %162 : vector<8x128xf32>
    %c50 = arith.constant 50 : index
    %164 = memref.load %arg1[%c50] : memref<54xf32, #tpu.memory_space<smem>>
    %165 = vector.broadcast %164 : f32 to vector<8x128xf32>
    %166 = arith.mulf %165, %19 : vector<8x128xf32>
    %167 = arith.addf %163, %166 : vector<8x128xf32>
    %168 = vector.broadcast %cst : f32 to vector<8x128xf32>
    %169 = arith.mulf %167, %168 : vector<8x128xf32>
    %c6 = arith.constant 6 : index
    %170 = memref.load %arg1[%c6] : memref<54xf32, #tpu.memory_space<smem>>
    %171 = vector.broadcast %170 : f32 to vector<8x128xf32>
    %172 = arith.mulf %171, %4 : vector<8x128xf32>
    %c15 = arith.constant 15 : index
    %173 = memref.load %arg1[%c15] : memref<54xf32, #tpu.memory_space<smem>>
    %174 = vector.broadcast %173 : f32 to vector<8x128xf32>
    %175 = arith.mulf %174, %7 : vector<8x128xf32>
    %176 = arith.addf %172, %175 : vector<8x128xf32>
    %c24 = arith.constant 24 : index
    %177 = memref.load %arg1[%c24] : memref<54xf32, #tpu.memory_space<smem>>
    %178 = vector.broadcast %177 : f32 to vector<8x128xf32>
    %179 = arith.mulf %178, %10 : vector<8x128xf32>
    %180 = arith.addf %176, %179 : vector<8x128xf32>
    %c33 = arith.constant 33 : index
    %181 = memref.load %arg1[%c33] : memref<54xf32, #tpu.memory_space<smem>>
    %182 = vector.broadcast %181 : f32 to vector<8x128xf32>
    %183 = arith.mulf %182, %13 : vector<8x128xf32>
    %184 = arith.addf %180, %183 : vector<8x128xf32>
    %c42 = arith.constant 42 : index
    %185 = memref.load %arg1[%c42] : memref<54xf32, #tpu.memory_space<smem>>
    %186 = vector.broadcast %185 : f32 to vector<8x128xf32>
    %187 = arith.mulf %186, %16 : vector<8x128xf32>
    %188 = arith.addf %184, %187 : vector<8x128xf32>
    %c51 = arith.constant 51 : index
    %189 = memref.load %arg1[%c51] : memref<54xf32, #tpu.memory_space<smem>>
    %190 = vector.broadcast %189 : f32 to vector<8x128xf32>
    %191 = arith.mulf %190, %19 : vector<8x128xf32>
    %192 = arith.addf %188, %191 : vector<8x128xf32>
    %193 = vector.broadcast %cst : f32 to vector<8x128xf32>
    %194 = arith.mulf %192, %193 : vector<8x128xf32>
    %c7 = arith.constant 7 : index
    %195 = memref.load %arg1[%c7] : memref<54xf32, #tpu.memory_space<smem>>
    %196 = vector.broadcast %195 : f32 to vector<8x128xf32>
    %197 = arith.mulf %196, %4 : vector<8x128xf32>
    %c16 = arith.constant 16 : index
    %198 = memref.load %arg1[%c16] : memref<54xf32, #tpu.memory_space<smem>>
    %199 = vector.broadcast %198 : f32 to vector<8x128xf32>
    %200 = arith.mulf %199, %7 : vector<8x128xf32>
    %201 = arith.addf %197, %200 : vector<8x128xf32>
    %c25 = arith.constant 25 : index
    %202 = memref.load %arg1[%c25] : memref<54xf32, #tpu.memory_space<smem>>
    %203 = vector.broadcast %202 : f32 to vector<8x128xf32>
    %204 = arith.mulf %203, %10 : vector<8x128xf32>
    %205 = arith.addf %201, %204 : vector<8x128xf32>
    %c34 = arith.constant 34 : index
    %206 = memref.load %arg1[%c34] : memref<54xf32, #tpu.memory_space<smem>>
    %207 = vector.broadcast %206 : f32 to vector<8x128xf32>
    %208 = arith.mulf %207, %13 : vector<8x128xf32>
    %209 = arith.addf %205, %208 : vector<8x128xf32>
    %c43 = arith.constant 43 : index
    %210 = memref.load %arg1[%c43] : memref<54xf32, #tpu.memory_space<smem>>
    %211 = vector.broadcast %210 : f32 to vector<8x128xf32>
    %212 = arith.mulf %211, %16 : vector<8x128xf32>
    %213 = arith.addf %209, %212 : vector<8x128xf32>
    %c52 = arith.constant 52 : index
    %214 = memref.load %arg1[%c52] : memref<54xf32, #tpu.memory_space<smem>>
    %215 = vector.broadcast %214 : f32 to vector<8x128xf32>
    %216 = arith.mulf %215, %19 : vector<8x128xf32>
    %217 = arith.addf %213, %216 : vector<8x128xf32>
    %218 = vector.broadcast %cst : f32 to vector<8x128xf32>
    %219 = arith.mulf %217, %218 : vector<8x128xf32>
    %c8 = arith.constant 8 : index
    %220 = memref.load %arg1[%c8] : memref<54xf32, #tpu.memory_space<smem>>
    %221 = vector.broadcast %220 : f32 to vector<8x128xf32>
    %222 = arith.mulf %221, %4 : vector<8x128xf32>
    %c17 = arith.constant 17 : index
    %223 = memref.load %arg1[%c17] : memref<54xf32, #tpu.memory_space<smem>>
    %224 = vector.broadcast %223 : f32 to vector<8x128xf32>
    %225 = arith.mulf %224, %7 : vector<8x128xf32>
    %226 = arith.addf %222, %225 : vector<8x128xf32>
    %c26 = arith.constant 26 : index
    %227 = memref.load %arg1[%c26] : memref<54xf32, #tpu.memory_space<smem>>
    %228 = vector.broadcast %227 : f32 to vector<8x128xf32>
    %229 = arith.mulf %228, %10 : vector<8x128xf32>
    %230 = arith.addf %226, %229 : vector<8x128xf32>
    %c35 = arith.constant 35 : index
    %231 = memref.load %arg1[%c35] : memref<54xf32, #tpu.memory_space<smem>>
    %232 = vector.broadcast %231 : f32 to vector<8x128xf32>
    %233 = arith.mulf %232, %13 : vector<8x128xf32>
    %234 = arith.addf %230, %233 : vector<8x128xf32>
    %c44 = arith.constant 44 : index
    %235 = memref.load %arg1[%c44] : memref<54xf32, #tpu.memory_space<smem>>
    %236 = vector.broadcast %235 : f32 to vector<8x128xf32>
    %237 = arith.mulf %236, %16 : vector<8x128xf32>
    %238 = arith.addf %234, %237 : vector<8x128xf32>
    %c53 = arith.constant 53 : index
    %239 = memref.load %arg1[%c53] : memref<54xf32, #tpu.memory_space<smem>>
    %240 = vector.broadcast %239 : f32 to vector<8x128xf32>
    %241 = arith.mulf %240, %19 : vector<8x128xf32>
    %242 = arith.addf %238, %241 : vector<8x128xf32>
    %243 = vector.broadcast %cst : f32 to vector<8x128xf32>
    %244 = arith.mulf %242, %243 : vector<8x128xf32>
    %245 = arith.mulf %44, %44 : vector<8x128xf32>
    %246 = arith.mulf %69, %119 : vector<8x128xf32>
    %247 = arith.addf %245, %246 : vector<8x128xf32>
    %248 = arith.mulf %94, %194 : vector<8x128xf32>
    %249 = arith.addf %247, %248 : vector<8x128xf32>
    %250 = arith.mulf %44, %69 : vector<8x128xf32>
    %251 = arith.mulf %69, %144 : vector<8x128xf32>
    %252 = arith.addf %250, %251 : vector<8x128xf32>
    %253 = arith.mulf %94, %219 : vector<8x128xf32>
    %254 = arith.addf %252, %253 : vector<8x128xf32>
    %255 = arith.mulf %44, %94 : vector<8x128xf32>
    %256 = arith.mulf %69, %169 : vector<8x128xf32>
    %257 = arith.addf %255, %256 : vector<8x128xf32>
    %258 = arith.mulf %94, %244 : vector<8x128xf32>
    %259 = arith.addf %257, %258 : vector<8x128xf32>
    %260 = arith.mulf %119, %44 : vector<8x128xf32>
    %261 = arith.mulf %144, %119 : vector<8x128xf32>
    %262 = arith.addf %260, %261 : vector<8x128xf32>
    %263 = arith.mulf %169, %194 : vector<8x128xf32>
    %264 = arith.addf %262, %263 : vector<8x128xf32>
    %265 = arith.mulf %119, %69 : vector<8x128xf32>
    %266 = arith.mulf %144, %144 : vector<8x128xf32>
    %267 = arith.addf %265, %266 : vector<8x128xf32>
    %268 = arith.mulf %169, %219 : vector<8x128xf32>
    %269 = arith.addf %267, %268 : vector<8x128xf32>
    %270 = arith.mulf %119, %94 : vector<8x128xf32>
    %271 = arith.mulf %144, %169 : vector<8x128xf32>
    %272 = arith.addf %270, %271 : vector<8x128xf32>
    %273 = arith.mulf %169, %244 : vector<8x128xf32>
    %274 = arith.addf %272, %273 : vector<8x128xf32>
    %275 = arith.mulf %194, %44 : vector<8x128xf32>
    %276 = arith.mulf %219, %119 : vector<8x128xf32>
    %277 = arith.addf %275, %276 : vector<8x128xf32>
    %278 = arith.mulf %244, %194 : vector<8x128xf32>
    %279 = arith.addf %277, %278 : vector<8x128xf32>
    %280 = arith.mulf %194, %69 : vector<8x128xf32>
    %281 = arith.mulf %219, %144 : vector<8x128xf32>
    %282 = arith.addf %280, %281 : vector<8x128xf32>
    %283 = arith.mulf %244, %219 : vector<8x128xf32>
    %284 = arith.addf %282, %283 : vector<8x128xf32>
    %285 = arith.mulf %194, %94 : vector<8x128xf32>
    %286 = arith.mulf %219, %169 : vector<8x128xf32>
    %287 = arith.addf %285, %286 : vector<8x128xf32>
    %288 = arith.mulf %244, %244 : vector<8x128xf32>
    %289 = arith.addf %287, %288 : vector<8x128xf32>
    %cst_12 = arith.constant 0.166666672 : f32
    %290 = vector.broadcast %cst_12 : f32 to vector<8x128xf32>
    %291 = arith.mulf %44, %290 : vector<8x128xf32>
    %cst_13 = arith.constant 0.0416666679 : f32
    %292 = vector.broadcast %cst_13 : f32 to vector<8x128xf32>
    %293 = arith.mulf %249, %292 : vector<8x128xf32>
    %294 = arith.addf %291, %293 : vector<8x128xf32>
    %cst_14 = arith.constant 0.166666672 : f32
    %295 = vector.broadcast %cst_14 : f32 to vector<8x128xf32>
    %296 = arith.mulf %69, %295 : vector<8x128xf32>
    %cst_15 = arith.constant 0.0416666679 : f32
    %297 = vector.broadcast %cst_15 : f32 to vector<8x128xf32>
    %298 = arith.mulf %254, %297 : vector<8x128xf32>
    %299 = arith.addf %296, %298 : vector<8x128xf32>
    %cst_16 = arith.constant 0.166666672 : f32
    %300 = vector.broadcast %cst_16 : f32 to vector<8x128xf32>
    %301 = arith.mulf %94, %300 : vector<8x128xf32>
    %cst_17 = arith.constant 0.0416666679 : f32
    %302 = vector.broadcast %cst_17 : f32 to vector<8x128xf32>
    %303 = arith.mulf %259, %302 : vector<8x128xf32>
    %304 = arith.addf %301, %303 : vector<8x128xf32>
    %cst_18 = arith.constant 0.166666672 : f32
    %305 = vector.broadcast %cst_18 : f32 to vector<8x128xf32>
    %306 = arith.mulf %119, %305 : vector<8x128xf32>
    %cst_19 = arith.constant 0.0416666679 : f32
    %307 = vector.broadcast %cst_19 : f32 to vector<8x128xf32>
    %308 = arith.mulf %264, %307 : vector<8x128xf32>
    %309 = arith.addf %306, %308 : vector<8x128xf32>
    %cst_20 = arith.constant 0.166666672 : f32
    %310 = vector.broadcast %cst_20 : f32 to vector<8x128xf32>
    %311 = arith.mulf %144, %310 : vector<8x128xf32>
    %cst_21 = arith.constant 0.0416666679 : f32
    %312 = vector.broadcast %cst_21 : f32 to vector<8x128xf32>
    %313 = arith.mulf %269, %312 : vector<8x128xf32>
    %314 = arith.addf %311, %313 : vector<8x128xf32>
    %cst_22 = arith.constant 0.166666672 : f32
    %315 = vector.broadcast %cst_22 : f32 to vector<8x128xf32>
    %316 = arith.mulf %169, %315 : vector<8x128xf32>
    %cst_23 = arith.constant 0.0416666679 : f32
    %317 = vector.broadcast %cst_23 : f32 to vector<8x128xf32>
    %318 = arith.mulf %274, %317 : vector<8x128xf32>
    %319 = arith.addf %316, %318 : vector<8x128xf32>
    %cst_24 = arith.constant 0.166666672 : f32
    %320 = vector.broadcast %cst_24 : f32 to vector<8x128xf32>
    %321 = arith.mulf %194, %320 : vector<8x128xf32>
    %cst_25 = arith.constant 0.0416666679 : f32
    %322 = vector.broadcast %cst_25 : f32 to vector<8x128xf32>
    %323 = arith.mulf %279, %322 : vector<8x128xf32>
    %324 = arith.addf %321, %323 : vector<8x128xf32>
    %cst_26 = arith.constant 0.166666672 : f32
    %325 = vector.broadcast %cst_26 : f32 to vector<8x128xf32>
    %326 = arith.mulf %219, %325 : vector<8x128xf32>
    %cst_27 = arith.constant 0.0416666679 : f32
    %327 = vector.broadcast %cst_27 : f32 to vector<8x128xf32>
    %328 = arith.mulf %284, %327 : vector<8x128xf32>
    %329 = arith.addf %326, %328 : vector<8x128xf32>
    %cst_28 = arith.constant 0.166666672 : f32
    %330 = vector.broadcast %cst_28 : f32 to vector<8x128xf32>
    %331 = arith.mulf %244, %330 : vector<8x128xf32>
    %cst_29 = arith.constant 0.0416666679 : f32
    %332 = vector.broadcast %cst_29 : f32 to vector<8x128xf32>
    %333 = arith.mulf %289, %332 : vector<8x128xf32>
    %334 = arith.addf %331, %333 : vector<8x128xf32>
    %335 = arith.mulf %249, %294 : vector<8x128xf32>
    %336 = arith.mulf %254, %309 : vector<8x128xf32>
    %337 = arith.addf %335, %336 : vector<8x128xf32>
    %338 = arith.mulf %259, %324 : vector<8x128xf32>
    %339 = arith.addf %337, %338 : vector<8x128xf32>
    %340 = arith.mulf %249, %299 : vector<8x128xf32>
    %341 = arith.mulf %254, %314 : vector<8x128xf32>
    %342 = arith.addf %340, %341 : vector<8x128xf32>
    %343 = arith.mulf %259, %329 : vector<8x128xf32>
    %344 = arith.addf %342, %343 : vector<8x128xf32>
    %345 = arith.mulf %249, %304 : vector<8x128xf32>
    %346 = arith.mulf %254, %319 : vector<8x128xf32>
    %347 = arith.addf %345, %346 : vector<8x128xf32>
    %348 = arith.mulf %259, %334 : vector<8x128xf32>
    %349 = arith.addf %347, %348 : vector<8x128xf32>
    %350 = arith.mulf %264, %294 : vector<8x128xf32>
    %351 = arith.mulf %269, %309 : vector<8x128xf32>
    %352 = arith.addf %350, %351 : vector<8x128xf32>
    %353 = arith.mulf %274, %324 : vector<8x128xf32>
    %354 = arith.addf %352, %353 : vector<8x128xf32>
    %355 = arith.mulf %264, %299 : vector<8x128xf32>
    %356 = arith.mulf %269, %314 : vector<8x128xf32>
    %357 = arith.addf %355, %356 : vector<8x128xf32>
    %358 = arith.mulf %274, %329 : vector<8x128xf32>
    %359 = arith.addf %357, %358 : vector<8x128xf32>
    %360 = arith.mulf %264, %304 : vector<8x128xf32>
    %361 = arith.mulf %269, %319 : vector<8x128xf32>
    %362 = arith.addf %360, %361 : vector<8x128xf32>
    %363 = arith.mulf %274, %334 : vector<8x128xf32>
    %364 = arith.addf %362, %363 : vector<8x128xf32>
    %365 = arith.mulf %279, %294 : vector<8x128xf32>
    %366 = arith.mulf %284, %309 : vector<8x128xf32>
    %367 = arith.addf %365, %366 : vector<8x128xf32>
    %368 = arith.mulf %289, %324 : vector<8x128xf32>
    %369 = arith.addf %367, %368 : vector<8x128xf32>
    %370 = arith.mulf %279, %299 : vector<8x128xf32>
    %371 = arith.mulf %284, %314 : vector<8x128xf32>
    %372 = arith.addf %370, %371 : vector<8x128xf32>
    %373 = arith.mulf %289, %329 : vector<8x128xf32>
    %374 = arith.addf %372, %373 : vector<8x128xf32>
    %375 = arith.mulf %279, %304 : vector<8x128xf32>
    %376 = arith.mulf %284, %319 : vector<8x128xf32>
    %377 = arith.addf %375, %376 : vector<8x128xf32>
    %378 = arith.mulf %289, %334 : vector<8x128xf32>
    %379 = arith.addf %377, %378 : vector<8x128xf32>
    %cst_30 = arith.constant 5.000000e-01 : f32
    %380 = vector.broadcast %cst_30 : f32 to vector<8x128xf32>
    %381 = arith.mulf %380, %249 : vector<8x128xf32>
    %382 = arith.addf %44, %381 : vector<8x128xf32>
    %383 = arith.addf %382, %339 : vector<8x128xf32>
    %cst_31 = arith.constant 5.000000e-01 : f32
    %384 = vector.broadcast %cst_31 : f32 to vector<8x128xf32>
    %385 = arith.mulf %384, %254 : vector<8x128xf32>
    %386 = arith.addf %69, %385 : vector<8x128xf32>
    %387 = arith.addf %386, %344 : vector<8x128xf32>
    %cst_32 = arith.constant 5.000000e-01 : f32
    %388 = vector.broadcast %cst_32 : f32 to vector<8x128xf32>
    %389 = arith.mulf %388, %259 : vector<8x128xf32>
    %390 = arith.addf %94, %389 : vector<8x128xf32>
    %391 = arith.addf %390, %349 : vector<8x128xf32>
    %cst_33 = arith.constant 5.000000e-01 : f32
    %392 = vector.broadcast %cst_33 : f32 to vector<8x128xf32>
    %393 = arith.mulf %392, %264 : vector<8x128xf32>
    %394 = arith.addf %119, %393 : vector<8x128xf32>
    %395 = arith.addf %394, %354 : vector<8x128xf32>
    %cst_34 = arith.constant 5.000000e-01 : f32
    %396 = vector.broadcast %cst_34 : f32 to vector<8x128xf32>
    %397 = arith.mulf %396, %269 : vector<8x128xf32>
    %398 = arith.addf %144, %397 : vector<8x128xf32>
    %399 = arith.addf %398, %359 : vector<8x128xf32>
    %cst_35 = arith.constant 5.000000e-01 : f32
    %400 = vector.broadcast %cst_35 : f32 to vector<8x128xf32>
    %401 = arith.mulf %400, %274 : vector<8x128xf32>
    %402 = arith.addf %169, %401 : vector<8x128xf32>
    %403 = arith.addf %402, %364 : vector<8x128xf32>
    %cst_36 = arith.constant 5.000000e-01 : f32
    %404 = vector.broadcast %cst_36 : f32 to vector<8x128xf32>
    %405 = arith.mulf %404, %279 : vector<8x128xf32>
    %406 = arith.addf %194, %405 : vector<8x128xf32>
    %407 = arith.addf %406, %369 : vector<8x128xf32>
    %cst_37 = arith.constant 5.000000e-01 : f32
    %408 = vector.broadcast %cst_37 : f32 to vector<8x128xf32>
    %409 = arith.mulf %408, %284 : vector<8x128xf32>
    %410 = arith.addf %219, %409 : vector<8x128xf32>
    %411 = arith.addf %410, %374 : vector<8x128xf32>
    %cst_38 = arith.constant 5.000000e-01 : f32
    %412 = vector.broadcast %cst_38 : f32 to vector<8x128xf32>
    %413 = arith.mulf %412, %289 : vector<8x128xf32>
    %414 = arith.addf %244, %413 : vector<8x128xf32>
    %415 = arith.addf %414, %379 : vector<8x128xf32>
    %416 = arith.mulf %383, %383 : vector<8x128xf32>
    %417 = arith.mulf %387, %395 : vector<8x128xf32>
    %418 = arith.addf %416, %417 : vector<8x128xf32>
    %419 = arith.mulf %391, %407 : vector<8x128xf32>
    %420 = arith.addf %418, %419 : vector<8x128xf32>
    %421 = arith.mulf %383, %387 : vector<8x128xf32>
    %422 = arith.mulf %387, %399 : vector<8x128xf32>
    %423 = arith.addf %421, %422 : vector<8x128xf32>
    %424 = arith.mulf %391, %411 : vector<8x128xf32>
    %425 = arith.addf %423, %424 : vector<8x128xf32>
    %426 = arith.mulf %383, %391 : vector<8x128xf32>
    %427 = arith.mulf %387, %403 : vector<8x128xf32>
    %428 = arith.addf %426, %427 : vector<8x128xf32>
    %429 = arith.mulf %391, %415 : vector<8x128xf32>
    %430 = arith.addf %428, %429 : vector<8x128xf32>
    %431 = arith.mulf %395, %383 : vector<8x128xf32>
    %432 = arith.mulf %399, %395 : vector<8x128xf32>
    %433 = arith.addf %431, %432 : vector<8x128xf32>
    %434 = arith.mulf %403, %407 : vector<8x128xf32>
    %435 = arith.addf %433, %434 : vector<8x128xf32>
    %436 = arith.mulf %395, %387 : vector<8x128xf32>
    %437 = arith.mulf %399, %399 : vector<8x128xf32>
    %438 = arith.addf %436, %437 : vector<8x128xf32>
    %439 = arith.mulf %403, %411 : vector<8x128xf32>
    %440 = arith.addf %438, %439 : vector<8x128xf32>
    %441 = arith.mulf %395, %391 : vector<8x128xf32>
    %442 = arith.mulf %399, %403 : vector<8x128xf32>
    %443 = arith.addf %441, %442 : vector<8x128xf32>
    %444 = arith.mulf %403, %415 : vector<8x128xf32>
    %445 = arith.addf %443, %444 : vector<8x128xf32>
    %446 = arith.mulf %407, %383 : vector<8x128xf32>
    %447 = arith.mulf %411, %395 : vector<8x128xf32>
    %448 = arith.addf %446, %447 : vector<8x128xf32>
    %449 = arith.mulf %415, %407 : vector<8x128xf32>
    %450 = arith.addf %448, %449 : vector<8x128xf32>
    %451 = arith.mulf %407, %387 : vector<8x128xf32>
    %452 = arith.mulf %411, %399 : vector<8x128xf32>
    %453 = arith.addf %451, %452 : vector<8x128xf32>
    %454 = arith.mulf %415, %411 : vector<8x128xf32>
    %455 = arith.addf %453, %454 : vector<8x128xf32>
    %456 = arith.mulf %407, %391 : vector<8x128xf32>
    %457 = arith.mulf %411, %403 : vector<8x128xf32>
    %458 = arith.addf %456, %457 : vector<8x128xf32>
    %459 = arith.mulf %415, %415 : vector<8x128xf32>
    %460 = arith.addf %458, %459 : vector<8x128xf32>
    %cst_39 = arith.constant 2.000000e+00 : f32
    %461 = vector.broadcast %cst_39 : f32 to vector<8x128xf32>
    %462 = arith.mulf %461, %383 : vector<8x128xf32>
    %463 = arith.addf %462, %420 : vector<8x128xf32>
    %cst_40 = arith.constant 2.000000e+00 : f32
    %464 = vector.broadcast %cst_40 : f32 to vector<8x128xf32>
    %465 = arith.mulf %464, %387 : vector<8x128xf32>
    %466 = arith.addf %465, %425 : vector<8x128xf32>
    %cst_41 = arith.constant 2.000000e+00 : f32
    %467 = vector.broadcast %cst_41 : f32 to vector<8x128xf32>
    %468 = arith.mulf %467, %391 : vector<8x128xf32>
    %469 = arith.addf %468, %430 : vector<8x128xf32>
    %cst_42 = arith.constant 2.000000e+00 : f32
    %470 = vector.broadcast %cst_42 : f32 to vector<8x128xf32>
    %471 = arith.mulf %470, %395 : vector<8x128xf32>
    %472 = arith.addf %471, %435 : vector<8x128xf32>
    %cst_43 = arith.constant 2.000000e+00 : f32
    %473 = vector.broadcast %cst_43 : f32 to vector<8x128xf32>
    %474 = arith.mulf %473, %399 : vector<8x128xf32>
    %475 = arith.addf %474, %440 : vector<8x128xf32>
    %cst_44 = arith.constant 2.000000e+00 : f32
    %476 = vector.broadcast %cst_44 : f32 to vector<8x128xf32>
    %477 = arith.mulf %476, %403 : vector<8x128xf32>
    %478 = arith.addf %477, %445 : vector<8x128xf32>
    %cst_45 = arith.constant 2.000000e+00 : f32
    %479 = vector.broadcast %cst_45 : f32 to vector<8x128xf32>
    %480 = arith.mulf %479, %407 : vector<8x128xf32>
    %481 = arith.addf %480, %450 : vector<8x128xf32>
    %cst_46 = arith.constant 2.000000e+00 : f32
    %482 = vector.broadcast %cst_46 : f32 to vector<8x128xf32>
    %483 = arith.mulf %482, %411 : vector<8x128xf32>
    %484 = arith.addf %483, %455 : vector<8x128xf32>
    %cst_47 = arith.constant 2.000000e+00 : f32
    %485 = vector.broadcast %cst_47 : f32 to vector<8x128xf32>
    %486 = arith.mulf %485, %415 : vector<8x128xf32>
    %487 = arith.addf %486, %460 : vector<8x128xf32>
    %488 = arith.mulf %463, %463 : vector<8x128xf32>
    %489 = arith.mulf %466, %472 : vector<8x128xf32>
    %490 = arith.addf %488, %489 : vector<8x128xf32>
    %491 = arith.mulf %469, %481 : vector<8x128xf32>
    %492 = arith.addf %490, %491 : vector<8x128xf32>
    %493 = arith.mulf %463, %466 : vector<8x128xf32>
    %494 = arith.mulf %466, %475 : vector<8x128xf32>
    %495 = arith.addf %493, %494 : vector<8x128xf32>
    %496 = arith.mulf %469, %484 : vector<8x128xf32>
    %497 = arith.addf %495, %496 : vector<8x128xf32>
    %498 = arith.mulf %463, %469 : vector<8x128xf32>
    %499 = arith.mulf %466, %478 : vector<8x128xf32>
    %500 = arith.addf %498, %499 : vector<8x128xf32>
    %501 = arith.mulf %469, %487 : vector<8x128xf32>
    %502 = arith.addf %500, %501 : vector<8x128xf32>
    %503 = arith.mulf %472, %463 : vector<8x128xf32>
    %504 = arith.mulf %475, %472 : vector<8x128xf32>
    %505 = arith.addf %503, %504 : vector<8x128xf32>
    %506 = arith.mulf %478, %481 : vector<8x128xf32>
    %507 = arith.addf %505, %506 : vector<8x128xf32>
    %508 = arith.mulf %472, %466 : vector<8x128xf32>
    %509 = arith.mulf %475, %475 : vector<8x128xf32>
    %510 = arith.addf %508, %509 : vector<8x128xf32>
    %511 = arith.mulf %478, %484 : vector<8x128xf32>
    %512 = arith.addf %510, %511 : vector<8x128xf32>
    %513 = arith.mulf %472, %469 : vector<8x128xf32>
    %514 = arith.mulf %475, %478 : vector<8x128xf32>
    %515 = arith.addf %513, %514 : vector<8x128xf32>
    %516 = arith.mulf %478, %487 : vector<8x128xf32>
    %517 = arith.addf %515, %516 : vector<8x128xf32>
    %518 = arith.mulf %481, %463 : vector<8x128xf32>
    %519 = arith.mulf %484, %472 : vector<8x128xf32>
    %520 = arith.addf %518, %519 : vector<8x128xf32>
    %521 = arith.mulf %487, %481 : vector<8x128xf32>
    %522 = arith.addf %520, %521 : vector<8x128xf32>
    %523 = arith.mulf %481, %466 : vector<8x128xf32>
    %524 = arith.mulf %484, %475 : vector<8x128xf32>
    %525 = arith.addf %523, %524 : vector<8x128xf32>
    %526 = arith.mulf %487, %484 : vector<8x128xf32>
    %527 = arith.addf %525, %526 : vector<8x128xf32>
    %528 = arith.mulf %481, %469 : vector<8x128xf32>
    %529 = arith.mulf %484, %478 : vector<8x128xf32>
    %530 = arith.addf %528, %529 : vector<8x128xf32>
    %531 = arith.mulf %487, %487 : vector<8x128xf32>
    %532 = arith.addf %530, %531 : vector<8x128xf32>
    %cst_48 = arith.constant 2.000000e+00 : f32
    %533 = vector.broadcast %cst_48 : f32 to vector<8x128xf32>
    %534 = arith.mulf %533, %463 : vector<8x128xf32>
    %535 = arith.addf %534, %492 : vector<8x128xf32>
    %cst_49 = arith.constant 2.000000e+00 : f32
    %536 = vector.broadcast %cst_49 : f32 to vector<8x128xf32>
    %537 = arith.mulf %536, %466 : vector<8x128xf32>
    %538 = arith.addf %537, %497 : vector<8x128xf32>
    %cst_50 = arith.constant 2.000000e+00 : f32
    %539 = vector.broadcast %cst_50 : f32 to vector<8x128xf32>
    %540 = arith.mulf %539, %469 : vector<8x128xf32>
    %541 = arith.addf %540, %502 : vector<8x128xf32>
    %cst_51 = arith.constant 2.000000e+00 : f32
    %542 = vector.broadcast %cst_51 : f32 to vector<8x128xf32>
    %543 = arith.mulf %542, %472 : vector<8x128xf32>
    %544 = arith.addf %543, %507 : vector<8x128xf32>
    %cst_52 = arith.constant 2.000000e+00 : f32
    %545 = vector.broadcast %cst_52 : f32 to vector<8x128xf32>
    %546 = arith.mulf %545, %475 : vector<8x128xf32>
    %547 = arith.addf %546, %512 : vector<8x128xf32>
    %cst_53 = arith.constant 2.000000e+00 : f32
    %548 = vector.broadcast %cst_53 : f32 to vector<8x128xf32>
    %549 = arith.mulf %548, %478 : vector<8x128xf32>
    %550 = arith.addf %549, %517 : vector<8x128xf32>
    %cst_54 = arith.constant 2.000000e+00 : f32
    %551 = vector.broadcast %cst_54 : f32 to vector<8x128xf32>
    %552 = arith.mulf %551, %481 : vector<8x128xf32>
    %553 = arith.addf %552, %522 : vector<8x128xf32>
    %cst_55 = arith.constant 2.000000e+00 : f32
    %554 = vector.broadcast %cst_55 : f32 to vector<8x128xf32>
    %555 = arith.mulf %554, %484 : vector<8x128xf32>
    %556 = arith.addf %555, %527 : vector<8x128xf32>
    %cst_56 = arith.constant 2.000000e+00 : f32
    %557 = vector.broadcast %cst_56 : f32 to vector<8x128xf32>
    %558 = arith.mulf %557, %487 : vector<8x128xf32>
    %559 = arith.addf %558, %532 : vector<8x128xf32>
    %560 = arith.mulf %535, %535 : vector<8x128xf32>
    %561 = arith.mulf %538, %544 : vector<8x128xf32>
    %562 = arith.addf %560, %561 : vector<8x128xf32>
    %563 = arith.mulf %541, %553 : vector<8x128xf32>
    %564 = arith.addf %562, %563 : vector<8x128xf32>
    %565 = arith.mulf %535, %538 : vector<8x128xf32>
    %566 = arith.mulf %538, %547 : vector<8x128xf32>
    %567 = arith.addf %565, %566 : vector<8x128xf32>
    %568 = arith.mulf %541, %556 : vector<8x128xf32>
    %569 = arith.addf %567, %568 : vector<8x128xf32>
    %570 = arith.mulf %535, %541 : vector<8x128xf32>
    %571 = arith.mulf %538, %550 : vector<8x128xf32>
    %572 = arith.addf %570, %571 : vector<8x128xf32>
    %573 = arith.mulf %541, %559 : vector<8x128xf32>
    %574 = arith.addf %572, %573 : vector<8x128xf32>
    %575 = arith.mulf %544, %535 : vector<8x128xf32>
    %576 = arith.mulf %547, %544 : vector<8x128xf32>
    %577 = arith.addf %575, %576 : vector<8x128xf32>
    %578 = arith.mulf %550, %553 : vector<8x128xf32>
    %579 = arith.addf %577, %578 : vector<8x128xf32>
    %580 = arith.mulf %544, %538 : vector<8x128xf32>
    %581 = arith.mulf %547, %547 : vector<8x128xf32>
    %582 = arith.addf %580, %581 : vector<8x128xf32>
    %583 = arith.mulf %550, %556 : vector<8x128xf32>
    %584 = arith.addf %582, %583 : vector<8x128xf32>
    %585 = arith.mulf %544, %541 : vector<8x128xf32>
    %586 = arith.mulf %547, %550 : vector<8x128xf32>
    %587 = arith.addf %585, %586 : vector<8x128xf32>
    %588 = arith.mulf %550, %559 : vector<8x128xf32>
    %589 = arith.addf %587, %588 : vector<8x128xf32>
    %590 = arith.mulf %553, %535 : vector<8x128xf32>
    %591 = arith.mulf %556, %544 : vector<8x128xf32>
    %592 = arith.addf %590, %591 : vector<8x128xf32>
    %593 = arith.mulf %559, %553 : vector<8x128xf32>
    %594 = arith.addf %592, %593 : vector<8x128xf32>
    %595 = arith.mulf %553, %538 : vector<8x128xf32>
    %596 = arith.mulf %556, %547 : vector<8x128xf32>
    %597 = arith.addf %595, %596 : vector<8x128xf32>
    %598 = arith.mulf %559, %556 : vector<8x128xf32>
    %599 = arith.addf %597, %598 : vector<8x128xf32>
    %600 = arith.mulf %553, %541 : vector<8x128xf32>
    %601 = arith.mulf %556, %550 : vector<8x128xf32>
    %602 = arith.addf %600, %601 : vector<8x128xf32>
    %603 = arith.mulf %559, %559 : vector<8x128xf32>
    %604 = arith.addf %602, %603 : vector<8x128xf32>
    %cst_57 = arith.constant 2.000000e+00 : f32
    %605 = vector.broadcast %cst_57 : f32 to vector<8x128xf32>
    %606 = arith.mulf %605, %535 : vector<8x128xf32>
    %607 = arith.addf %606, %564 : vector<8x128xf32>
    %cst_58 = arith.constant 2.000000e+00 : f32
    %608 = vector.broadcast %cst_58 : f32 to vector<8x128xf32>
    %609 = arith.mulf %608, %538 : vector<8x128xf32>
    %610 = arith.addf %609, %569 : vector<8x128xf32>
    %cst_59 = arith.constant 2.000000e+00 : f32
    %611 = vector.broadcast %cst_59 : f32 to vector<8x128xf32>
    %612 = arith.mulf %611, %541 : vector<8x128xf32>
    %613 = arith.addf %612, %574 : vector<8x128xf32>
    %cst_60 = arith.constant 2.000000e+00 : f32
    %614 = vector.broadcast %cst_60 : f32 to vector<8x128xf32>
    %615 = arith.mulf %614, %544 : vector<8x128xf32>
    %616 = arith.addf %615, %579 : vector<8x128xf32>
    %cst_61 = arith.constant 2.000000e+00 : f32
    %617 = vector.broadcast %cst_61 : f32 to vector<8x128xf32>
    %618 = arith.mulf %617, %547 : vector<8x128xf32>
    %619 = arith.addf %618, %584 : vector<8x128xf32>
    %cst_62 = arith.constant 2.000000e+00 : f32
    %620 = vector.broadcast %cst_62 : f32 to vector<8x128xf32>
    %621 = arith.mulf %620, %550 : vector<8x128xf32>
    %622 = arith.addf %621, %589 : vector<8x128xf32>
    %cst_63 = arith.constant 2.000000e+00 : f32
    %623 = vector.broadcast %cst_63 : f32 to vector<8x128xf32>
    %624 = arith.mulf %623, %553 : vector<8x128xf32>
    %625 = arith.addf %624, %594 : vector<8x128xf32>
    %cst_64 = arith.constant 2.000000e+00 : f32
    %626 = vector.broadcast %cst_64 : f32 to vector<8x128xf32>
    %627 = arith.mulf %626, %556 : vector<8x128xf32>
    %628 = arith.addf %627, %599 : vector<8x128xf32>
    %cst_65 = arith.constant 2.000000e+00 : f32
    %629 = vector.broadcast %cst_65 : f32 to vector<8x128xf32>
    %630 = arith.mulf %629, %559 : vector<8x128xf32>
    %631 = arith.addf %630, %604 : vector<8x128xf32>
    %632 = arith.mulf %607, %607 : vector<8x128xf32>
    %633 = arith.mulf %610, %616 : vector<8x128xf32>
    %634 = arith.addf %632, %633 : vector<8x128xf32>
    %635 = arith.mulf %613, %625 : vector<8x128xf32>
    %636 = arith.addf %634, %635 : vector<8x128xf32>
    %637 = arith.mulf %607, %610 : vector<8x128xf32>
    %638 = arith.mulf %610, %619 : vector<8x128xf32>
    %639 = arith.addf %637, %638 : vector<8x128xf32>
    %640 = arith.mulf %613, %628 : vector<8x128xf32>
    %641 = arith.addf %639, %640 : vector<8x128xf32>
    %642 = arith.mulf %607, %613 : vector<8x128xf32>
    %643 = arith.mulf %610, %622 : vector<8x128xf32>
    %644 = arith.addf %642, %643 : vector<8x128xf32>
    %645 = arith.mulf %613, %631 : vector<8x128xf32>
    %646 = arith.addf %644, %645 : vector<8x128xf32>
    %647 = arith.mulf %616, %607 : vector<8x128xf32>
    %648 = arith.mulf %619, %616 : vector<8x128xf32>
    %649 = arith.addf %647, %648 : vector<8x128xf32>
    %650 = arith.mulf %622, %625 : vector<8x128xf32>
    %651 = arith.addf %649, %650 : vector<8x128xf32>
    %652 = arith.mulf %616, %610 : vector<8x128xf32>
    %653 = arith.mulf %619, %619 : vector<8x128xf32>
    %654 = arith.addf %652, %653 : vector<8x128xf32>
    %655 = arith.mulf %622, %628 : vector<8x128xf32>
    %656 = arith.addf %654, %655 : vector<8x128xf32>
    %657 = arith.mulf %616, %613 : vector<8x128xf32>
    %658 = arith.mulf %619, %622 : vector<8x128xf32>
    %659 = arith.addf %657, %658 : vector<8x128xf32>
    %660 = arith.mulf %622, %631 : vector<8x128xf32>
    %661 = arith.addf %659, %660 : vector<8x128xf32>
    %662 = arith.mulf %625, %607 : vector<8x128xf32>
    %663 = arith.mulf %628, %616 : vector<8x128xf32>
    %664 = arith.addf %662, %663 : vector<8x128xf32>
    %665 = arith.mulf %631, %625 : vector<8x128xf32>
    %666 = arith.addf %664, %665 : vector<8x128xf32>
    %667 = arith.mulf %625, %610 : vector<8x128xf32>
    %668 = arith.mulf %628, %619 : vector<8x128xf32>
    %669 = arith.addf %667, %668 : vector<8x128xf32>
    %670 = arith.mulf %631, %628 : vector<8x128xf32>
    %671 = arith.addf %669, %670 : vector<8x128xf32>
    %672 = arith.mulf %625, %613 : vector<8x128xf32>
    %673 = arith.mulf %628, %622 : vector<8x128xf32>
    %674 = arith.addf %672, %673 : vector<8x128xf32>
    %675 = arith.mulf %631, %631 : vector<8x128xf32>
    %676 = arith.addf %674, %675 : vector<8x128xf32>
    %cst_66 = arith.constant 2.000000e+00 : f32
    %677 = vector.broadcast %cst_66 : f32 to vector<8x128xf32>
    %678 = arith.mulf %677, %607 : vector<8x128xf32>
    %679 = arith.addf %678, %636 : vector<8x128xf32>
    %cst_67 = arith.constant 2.000000e+00 : f32
    %680 = vector.broadcast %cst_67 : f32 to vector<8x128xf32>
    %681 = arith.mulf %680, %610 : vector<8x128xf32>
    %682 = arith.addf %681, %641 : vector<8x128xf32>
    %cst_68 = arith.constant 2.000000e+00 : f32
    %683 = vector.broadcast %cst_68 : f32 to vector<8x128xf32>
    %684 = arith.mulf %683, %613 : vector<8x128xf32>
    %685 = arith.addf %684, %646 : vector<8x128xf32>
    %cst_69 = arith.constant 2.000000e+00 : f32
    %686 = vector.broadcast %cst_69 : f32 to vector<8x128xf32>
    %687 = arith.mulf %686, %616 : vector<8x128xf32>
    %688 = arith.addf %687, %651 : vector<8x128xf32>
    %cst_70 = arith.constant 2.000000e+00 : f32
    %689 = vector.broadcast %cst_70 : f32 to vector<8x128xf32>
    %690 = arith.mulf %689, %619 : vector<8x128xf32>
    %691 = arith.addf %690, %656 : vector<8x128xf32>
    %cst_71 = arith.constant 2.000000e+00 : f32
    %692 = vector.broadcast %cst_71 : f32 to vector<8x128xf32>
    %693 = arith.mulf %692, %622 : vector<8x128xf32>
    %694 = arith.addf %693, %661 : vector<8x128xf32>
    %cst_72 = arith.constant 2.000000e+00 : f32
    %695 = vector.broadcast %cst_72 : f32 to vector<8x128xf32>
    %696 = arith.mulf %695, %625 : vector<8x128xf32>
    %697 = arith.addf %696, %666 : vector<8x128xf32>
    %cst_73 = arith.constant 2.000000e+00 : f32
    %698 = vector.broadcast %cst_73 : f32 to vector<8x128xf32>
    %699 = arith.mulf %698, %628 : vector<8x128xf32>
    %700 = arith.addf %699, %671 : vector<8x128xf32>
    %cst_74 = arith.constant 2.000000e+00 : f32
    %701 = vector.broadcast %cst_74 : f32 to vector<8x128xf32>
    %702 = arith.mulf %701, %631 : vector<8x128xf32>
    %703 = arith.addf %702, %676 : vector<8x128xf32>
    %704 = arith.mulf %679, %679 : vector<8x128xf32>
    %705 = arith.mulf %682, %688 : vector<8x128xf32>
    %706 = arith.addf %704, %705 : vector<8x128xf32>
    %707 = arith.mulf %685, %697 : vector<8x128xf32>
    %708 = arith.addf %706, %707 : vector<8x128xf32>
    %709 = arith.mulf %679, %682 : vector<8x128xf32>
    %710 = arith.mulf %682, %691 : vector<8x128xf32>
    %711 = arith.addf %709, %710 : vector<8x128xf32>
    %712 = arith.mulf %685, %700 : vector<8x128xf32>
    %713 = arith.addf %711, %712 : vector<8x128xf32>
    %714 = arith.mulf %679, %685 : vector<8x128xf32>
    %715 = arith.mulf %682, %694 : vector<8x128xf32>
    %716 = arith.addf %714, %715 : vector<8x128xf32>
    %717 = arith.mulf %685, %703 : vector<8x128xf32>
    %718 = arith.addf %716, %717 : vector<8x128xf32>
    %719 = arith.mulf %688, %679 : vector<8x128xf32>
    %720 = arith.mulf %691, %688 : vector<8x128xf32>
    %721 = arith.addf %719, %720 : vector<8x128xf32>
    %722 = arith.mulf %694, %697 : vector<8x128xf32>
    %723 = arith.addf %721, %722 : vector<8x128xf32>
    %724 = arith.mulf %688, %682 : vector<8x128xf32>
    %725 = arith.mulf %691, %691 : vector<8x128xf32>
    %726 = arith.addf %724, %725 : vector<8x128xf32>
    %727 = arith.mulf %694, %700 : vector<8x128xf32>
    %728 = arith.addf %726, %727 : vector<8x128xf32>
    %729 = arith.mulf %688, %685 : vector<8x128xf32>
    %730 = arith.mulf %691, %694 : vector<8x128xf32>
    %731 = arith.addf %729, %730 : vector<8x128xf32>
    %732 = arith.mulf %694, %703 : vector<8x128xf32>
    %733 = arith.addf %731, %732 : vector<8x128xf32>
    %734 = arith.mulf %697, %679 : vector<8x128xf32>
    %735 = arith.mulf %700, %688 : vector<8x128xf32>
    %736 = arith.addf %734, %735 : vector<8x128xf32>
    %737 = arith.mulf %703, %697 : vector<8x128xf32>
    %738 = arith.addf %736, %737 : vector<8x128xf32>
    %739 = arith.mulf %697, %682 : vector<8x128xf32>
    %740 = arith.mulf %700, %691 : vector<8x128xf32>
    %741 = arith.addf %739, %740 : vector<8x128xf32>
    %742 = arith.mulf %703, %700 : vector<8x128xf32>
    %743 = arith.addf %741, %742 : vector<8x128xf32>
    %744 = arith.mulf %697, %685 : vector<8x128xf32>
    %745 = arith.mulf %700, %694 : vector<8x128xf32>
    %746 = arith.addf %744, %745 : vector<8x128xf32>
    %747 = arith.mulf %703, %703 : vector<8x128xf32>
    %748 = arith.addf %746, %747 : vector<8x128xf32>
    %cst_75 = arith.constant 2.000000e+00 : f32
    %749 = vector.broadcast %cst_75 : f32 to vector<8x128xf32>
    %750 = arith.mulf %749, %679 : vector<8x128xf32>
    %751 = arith.addf %750, %708 : vector<8x128xf32>
    %cst_76 = arith.constant 2.000000e+00 : f32
    %752 = vector.broadcast %cst_76 : f32 to vector<8x128xf32>
    %753 = arith.mulf %752, %682 : vector<8x128xf32>
    %754 = arith.addf %753, %713 : vector<8x128xf32>
    %cst_77 = arith.constant 2.000000e+00 : f32
    %755 = vector.broadcast %cst_77 : f32 to vector<8x128xf32>
    %756 = arith.mulf %755, %685 : vector<8x128xf32>
    %757 = arith.addf %756, %718 : vector<8x128xf32>
    %cst_78 = arith.constant 2.000000e+00 : f32
    %758 = vector.broadcast %cst_78 : f32 to vector<8x128xf32>
    %759 = arith.mulf %758, %688 : vector<8x128xf32>
    %760 = arith.addf %759, %723 : vector<8x128xf32>
    %cst_79 = arith.constant 2.000000e+00 : f32
    %761 = vector.broadcast %cst_79 : f32 to vector<8x128xf32>
    %762 = arith.mulf %761, %691 : vector<8x128xf32>
    %763 = arith.addf %762, %728 : vector<8x128xf32>
    %cst_80 = arith.constant 2.000000e+00 : f32
    %764 = vector.broadcast %cst_80 : f32 to vector<8x128xf32>
    %765 = arith.mulf %764, %694 : vector<8x128xf32>
    %766 = arith.addf %765, %733 : vector<8x128xf32>
    %cst_81 = arith.constant 2.000000e+00 : f32
    %767 = vector.broadcast %cst_81 : f32 to vector<8x128xf32>
    %768 = arith.mulf %767, %697 : vector<8x128xf32>
    %769 = arith.addf %768, %738 : vector<8x128xf32>
    %cst_82 = arith.constant 2.000000e+00 : f32
    %770 = vector.broadcast %cst_82 : f32 to vector<8x128xf32>
    %771 = arith.mulf %770, %700 : vector<8x128xf32>
    %772 = arith.addf %771, %743 : vector<8x128xf32>
    %cst_83 = arith.constant 2.000000e+00 : f32
    %773 = vector.broadcast %cst_83 : f32 to vector<8x128xf32>
    %774 = arith.mulf %773, %703 : vector<8x128xf32>
    %775 = arith.addf %774, %748 : vector<8x128xf32>
    %776 = arith.mulf %751, %751 : vector<8x128xf32>
    %777 = arith.mulf %754, %760 : vector<8x128xf32>
    %778 = arith.addf %776, %777 : vector<8x128xf32>
    %779 = arith.mulf %757, %769 : vector<8x128xf32>
    %780 = arith.addf %778, %779 : vector<8x128xf32>
    %781 = arith.mulf %751, %754 : vector<8x128xf32>
    %782 = arith.mulf %754, %763 : vector<8x128xf32>
    %783 = arith.addf %781, %782 : vector<8x128xf32>
    %784 = arith.mulf %757, %772 : vector<8x128xf32>
    %785 = arith.addf %783, %784 : vector<8x128xf32>
    %786 = arith.mulf %751, %757 : vector<8x128xf32>
    %787 = arith.mulf %754, %766 : vector<8x128xf32>
    %788 = arith.addf %786, %787 : vector<8x128xf32>
    %789 = arith.mulf %757, %775 : vector<8x128xf32>
    %790 = arith.addf %788, %789 : vector<8x128xf32>
    %791 = arith.mulf %760, %751 : vector<8x128xf32>
    %792 = arith.mulf %763, %760 : vector<8x128xf32>
    %793 = arith.addf %791, %792 : vector<8x128xf32>
    %794 = arith.mulf %766, %769 : vector<8x128xf32>
    %795 = arith.addf %793, %794 : vector<8x128xf32>
    %796 = arith.mulf %760, %754 : vector<8x128xf32>
    %797 = arith.mulf %763, %763 : vector<8x128xf32>
    %798 = arith.addf %796, %797 : vector<8x128xf32>
    %799 = arith.mulf %766, %772 : vector<8x128xf32>
    %800 = arith.addf %798, %799 : vector<8x128xf32>
    %801 = arith.mulf %760, %757 : vector<8x128xf32>
    %802 = arith.mulf %763, %766 : vector<8x128xf32>
    %803 = arith.addf %801, %802 : vector<8x128xf32>
    %804 = arith.mulf %766, %775 : vector<8x128xf32>
    %805 = arith.addf %803, %804 : vector<8x128xf32>
    %806 = arith.mulf %769, %751 : vector<8x128xf32>
    %807 = arith.mulf %772, %760 : vector<8x128xf32>
    %808 = arith.addf %806, %807 : vector<8x128xf32>
    %809 = arith.mulf %775, %769 : vector<8x128xf32>
    %810 = arith.addf %808, %809 : vector<8x128xf32>
    %811 = arith.mulf %769, %754 : vector<8x128xf32>
    %812 = arith.mulf %772, %763 : vector<8x128xf32>
    %813 = arith.addf %811, %812 : vector<8x128xf32>
    %814 = arith.mulf %775, %772 : vector<8x128xf32>
    %815 = arith.addf %813, %814 : vector<8x128xf32>
    %816 = arith.mulf %769, %757 : vector<8x128xf32>
    %817 = arith.mulf %772, %766 : vector<8x128xf32>
    %818 = arith.addf %816, %817 : vector<8x128xf32>
    %819 = arith.mulf %775, %775 : vector<8x128xf32>
    %820 = arith.addf %818, %819 : vector<8x128xf32>
    %cst_84 = arith.constant 2.000000e+00 : f32
    %821 = vector.broadcast %cst_84 : f32 to vector<8x128xf32>
    %822 = arith.mulf %821, %751 : vector<8x128xf32>
    %823 = arith.addf %822, %780 : vector<8x128xf32>
    %cst_85 = arith.constant 2.000000e+00 : f32
    %824 = vector.broadcast %cst_85 : f32 to vector<8x128xf32>
    %825 = arith.mulf %824, %754 : vector<8x128xf32>
    %826 = arith.addf %825, %785 : vector<8x128xf32>
    %cst_86 = arith.constant 2.000000e+00 : f32
    %827 = vector.broadcast %cst_86 : f32 to vector<8x128xf32>
    %828 = arith.mulf %827, %757 : vector<8x128xf32>
    %829 = arith.addf %828, %790 : vector<8x128xf32>
    %cst_87 = arith.constant 2.000000e+00 : f32
    %830 = vector.broadcast %cst_87 : f32 to vector<8x128xf32>
    %831 = arith.mulf %830, %760 : vector<8x128xf32>
    %832 = arith.addf %831, %795 : vector<8x128xf32>
    %cst_88 = arith.constant 2.000000e+00 : f32
    %833 = vector.broadcast %cst_88 : f32 to vector<8x128xf32>
    %834 = arith.mulf %833, %763 : vector<8x128xf32>
    %835 = arith.addf %834, %800 : vector<8x128xf32>
    %cst_89 = arith.constant 2.000000e+00 : f32
    %836 = vector.broadcast %cst_89 : f32 to vector<8x128xf32>
    %837 = arith.mulf %836, %766 : vector<8x128xf32>
    %838 = arith.addf %837, %805 : vector<8x128xf32>
    %cst_90 = arith.constant 2.000000e+00 : f32
    %839 = vector.broadcast %cst_90 : f32 to vector<8x128xf32>
    %840 = arith.mulf %839, %769 : vector<8x128xf32>
    %841 = arith.addf %840, %810 : vector<8x128xf32>
    %cst_91 = arith.constant 2.000000e+00 : f32
    %842 = vector.broadcast %cst_91 : f32 to vector<8x128xf32>
    %843 = arith.mulf %842, %772 : vector<8x128xf32>
    %844 = arith.addf %843, %815 : vector<8x128xf32>
    %cst_92 = arith.constant 2.000000e+00 : f32
    %845 = vector.broadcast %cst_92 : f32 to vector<8x128xf32>
    %846 = arith.mulf %845, %775 : vector<8x128xf32>
    %847 = arith.addf %846, %820 : vector<8x128xf32>
    %c0_93 = arith.constant 0 : index
    %848 = arith.index_cast %1 : i32 to index
    %c0_94 = arith.constant 0 : index
    %849 = vector.load %arg3[%c0_93, %848, %c0_94] : memref<3x8x128xf32, #tpu.memory_space<vmem>>, vector<1x8x128xf32>
    %850 = vector.shape_cast %849 : vector<1x8x128xf32> to vector<8x128xf32>
    %c1_95 = arith.constant 1 : index
    %851 = arith.index_cast %1 : i32 to index
    %c0_96 = arith.constant 0 : index
    %852 = vector.load %arg3[%c1_95, %851, %c0_96] : memref<3x8x128xf32, #tpu.memory_space<vmem>>, vector<1x8x128xf32>
    %853 = vector.shape_cast %852 : vector<1x8x128xf32> to vector<8x128xf32>
    %c2_97 = arith.constant 2 : index
    %854 = arith.index_cast %1 : i32 to index
    %c0_98 = arith.constant 0 : index
    %855 = vector.load %arg3[%c2_97, %854, %c0_98] : memref<3x8x128xf32, #tpu.memory_space<vmem>>, vector<1x8x128xf32>
    %856 = vector.shape_cast %855 : vector<1x8x128xf32> to vector<8x128xf32>
    %857 = arith.mulf %823, %850 : vector<8x128xf32>
    %858 = arith.addf %850, %857 : vector<8x128xf32>
    %859 = arith.mulf %826, %853 : vector<8x128xf32>
    %860 = arith.addf %858, %859 : vector<8x128xf32>
    %861 = arith.mulf %829, %856 : vector<8x128xf32>
    %862 = arith.addf %860, %861 : vector<8x128xf32>
    %c0_99 = arith.constant 0 : index
    %863 = arith.index_cast %1 : i32 to index
    %c0_100 = arith.constant 0 : index
    %864 = vector.load %arg4[%c0_99, %863, %c0_100] : memref<3x8x128xf32, #tpu.memory_space<vmem>>, vector<1x8x128xf32>
    %865 = vector.shape_cast %864 : vector<1x8x128xf32> to vector<8x128xf32>
    %866 = vector.shape_cast %862 : vector<8x128xf32> to vector<1x8x128xf32>
    tpu.vector_store %arg4[%c0_99, %863, %c0_100], %866 {strides = array<i32>} : memref<3x8x128xf32, #tpu.memory_space<vmem>>, vector<1x8x128xf32>,
    %867 = arith.mulf %832, %850 : vector<8x128xf32>
    %868 = arith.addf %853, %867 : vector<8x128xf32>
    %869 = arith.mulf %835, %853 : vector<8x128xf32>
    %870 = arith.addf %868, %869 : vector<8x128xf32>
    %871 = arith.mulf %838, %856 : vector<8x128xf32>
    %872 = arith.addf %870, %871 : vector<8x128xf32>
    %c1_101 = arith.constant 1 : index
    %873 = arith.index_cast %1 : i32 to index
    %c0_102 = arith.constant 0 : index
    %874 = vector.load %arg4[%c1_101, %873, %c0_102] : memref<3x8x128xf32, #tpu.memory_space<vmem>>, vector<1x8x128xf32>
    %875 = vector.shape_cast %874 : vector<1x8x128xf32> to vector<8x128xf32>
    %876 = vector.shape_cast %872 : vector<8x128xf32> to vector<1x8x128xf32>
    tpu.vector_store %arg4[%c1_101, %873, %c0_102], %876 {strides = array<i32>} : memref<3x8x128xf32, #tpu.memory_space<vmem>>, vector<1x8x128xf32>,
    %877 = arith.mulf %841, %850 : vector<8x128xf32>
    %878 = arith.addf %856, %877 : vector<8x128xf32>
    %879 = arith.mulf %844, %853 : vector<8x128xf32>
    %880 = arith.addf %878, %879 : vector<8x128xf32>
    %881 = arith.mulf %847, %856 : vector<8x128xf32>
    %882 = arith.addf %880, %881 : vector<8x128xf32>
    %c2_103 = arith.constant 2 : index
    %883 = arith.index_cast %1 : i32 to index
    %c0_104 = arith.constant 0 : index
    %884 = vector.load %arg4[%c2_103, %883, %c0_104] : memref<3x8x128xf32, #tpu.memory_space<vmem>>, vector<1x8x128xf32>
    %885 = vector.shape_cast %884 : vector<1x8x128xf32> to vector<8x128xf32>
    %886 = vector.shape_cast %882 : vector<8x128xf32> to vector<1x8x128xf32>
    tpu.vector_store %arg4[%c2_103, %883, %c0_104], %886 {strides = array<i32>} : memref<3x8x128xf32, #tpu.memory_space<vmem>>, vector<1x8x128xf32>,
    %c1_i32 = arith.constant 1 : i32
    return
  }
  func.func @transform_0(%arg0: i32) -> i32 {
    %c0_i32 = arith.constant 0 : i32
    %c0_i32_0 = arith.constant 0 : i32
    return %c0_i32 : i32
  }
  func.func @transform_1(%arg0: i32) -> (i32, i32, i32) {
    %c0_i32 = arith.constant 0 : i32
    %c0_i32_0 = arith.constant 0 : i32
    %c0_i32_1 = arith.constant 0 : i32
    return %c0_i32, %arg0, %c0_i32_0 : i32, i32, i32
  }
  func.func @transform_2(%arg0: i32) -> (i32, i32, i32) {
    %c0_i32 = arith.constant 0 : i32
    %c0_i32_0 = arith.constant 0 : i32
    %c0_i32_1 = arith.constant 0 : i32
    return %c0_i32, %arg0, %c0_i32_0 : i32, i32, i32
  }
  func.func @transform_3(%arg0: i32) -> (i32, i32, i32) {
    %c0_i32 = arith.constant 0 : i32
    %c0_i32_0 = arith.constant 0 : i32
    %c0_i32_1 = arith.constant 0 : i32
    return %c0_i32, %arg0, %c0_i32_0 : i32, i32, i32
  }
}

</mosaic_0001>

<llo_original>
// kernel: tpu_custom_call.1
$region0: #{tpu_custom_call.1}
  #allocation0 [shape = 'u32[]', space=smem, size = 0x4, offset = 0x4, fixed_abs, tag = 'smem constant byte address 0x4 - core index']
  #allocation1 [shape = 'u32[144,128]{1,0:T(1,128)}', space=vmem, size = 0x12000, scoped, tag = 'internal scratch']
  %s0 = inlined_call_operand.hbm [shape: f32[54], index: 0, kind: input, shape index: {}]
  %s1 = inlined_call_operand.hbm [shape: f32[6,8,128], index: 1, kind: input, shape index: {}]
  %s2 = inlined_call_operand.hbm [shape: f32[3,8,128], index: 2, kind: input, shape index: {}]
  %s3 = inlined_call_operand.hbm [shape: f32[3,8,128], index: 3, kind: output, shape index: {}]
  %s4 = sld [smem:[#allocation0]]
  $region34: #{tpu_custom_call.1} parent=0
    _
  %s6 = ssub.s32 1, %s4
  %s7 = scalar_select 0, %s6, %s4
  $region1: #{tpu_custom_call.1} parent=0
    #allocation2 [shape = 'u8[512]{0}', space=smem, size = 0x200, scoped, tag = 'input window, operand 0, single buffered']
    #allocation3 [shape = 's32[1]{0}', space=sflag, size = 0x4, scoped, tag = 'scoped memory for tpu_custom_call.1']
    #allocation4 [shape = 's32[1]{0}', space=sflag, size = 0x4, scoped, tag = 'scoped memory for tpu_custom_call.1']
    #allocation5 [shape = 's32[1]{0}', space=sflag, size = 0x4, scoped, tag = 'scoped memory for tpu_custom_call.1']
    #allocation6 [shape = 'u8[24576]{0}', space=vmem, size = 0x6000, scoped, tag = 'input window, operand 1, single buffered']
    #allocation7 [shape = 'u8[12288]{0}', space=vmem, size = 0x3000, scoped, tag = 'input window, operand 2, single buffered']
    #allocation8 [shape = 's32[1]{0}', space=sflag, size = 0x4, scoped, tag = 'scoped memory for tpu_custom_call.1']
    #allocation9 [shape = 'u8[12288]{0}', space=vmem, size = 0x3000, scoped, tag = 'output window, operand 0, single buffered']
    %8 = vsyncpa [#allocation5], 0
    %9 = vsyncpa [#allocation3], 0
    %10 = vsyncpa [#allocation8], 0
    %11 = vsyncpa [#allocation4], 0
    // Predicated region
    $region2: #{tpu_custom_call.1} parent=1 // pred_check
      _
    $region3: #{tpu_custom_call.1} parent=1 // pred_check_branch
      %13 = sbr.rel (0) target = $region5
    $region4: #{tpu_custom_call.1} parent=1 // pred_region
      %s15 = ssub.s32 16, 16
      %16 = vsyncadd [#allocation5], %s15
      %19 = dma.hbm_to_smem %s0, 16, [#allocation2], [#allocation5]
    $region5: #{tpu_custom_call.1} parent=1 // pred_fallthru
      _
    // Predicated region
    $region6: #{tpu_custom_call.1} parent=1 // pred_check
      _
    $region7: #{tpu_custom_call.1} parent=1 // pred_check_branch
      %21 = sbr.rel (0) target = $region9
    $region8: #{tpu_custom_call.1} parent=1 // pred_region
      %s23 = ssub.s32 768, 768
      %24 = vsyncadd [#allocation3], %s23
      %s25 = sshll.u32 [#allocation6], 4
      %s26 = int_to_ptr.vmem [resolvable:$true] %s25
      %31 = dma.hbm_to_vmem [thread:$0]  %s1, 768, %s26, [#allocation3], 128, 128, 8
    $region9: #{tpu_custom_call.1} parent=1 // pred_fallthru
      _
    // Predicated region
    $region10: #{tpu_custom_call.1} parent=1 // pred_check
      _
    $region11: #{tpu_custom_call.1} parent=1 // pred_check_branch
      %33 = sbr.rel (0) target = $region13
    $region12: #{tpu_custom_call.1} parent=1 // pred_region
      %s35 = ssub.s32 384, 384
      %36 = vsyncadd [#allocation8], %s35
      %s37 = sshll.u32 [#allocation7], 4
      %s38 = int_to_ptr.vmem [resolvable:$true] %s37
      %43 = dma.hbm_to_vmem [thread:$0]  %s2, 384, %s38, [#allocation8], 128, 128, 8
    $region13: #{tpu_custom_call.1} parent=1 // pred_fallthru
      _
    // Predicated region
    $region14: #{tpu_custom_call.1} parent=1 // pred_check
      _
    $region15: #{tpu_custom_call.1} parent=1 // pred_check_branch
      %45 = sbr.rel (0) target = $region17
    $region16: #{tpu_custom_call.1} parent=1 // pred_region
      %46 = dma.done [#allocation5], 16
    $region17: #{tpu_custom_call.1} parent=1 // pred_fallthru
      _
    // Predicated region
    $region18: #{tpu_custom_call.1} parent=1 // pred_check
      _
    $region19: #{tpu_custom_call.1} parent=1 // pred_check_branch
      %48 = sbr.rel (0) target = $region21
    $region20: #{tpu_custom_call.1} parent=1 // pred_region
      %49 = dma.done [#allocation3], 768
    $region21: #{tpu_custom_call.1} parent=1 // pred_fallthru
      _
    // Predicated region
    $region22: #{tpu_custom_call.1} parent=1 // pred_check
      _
    $region23: #{tpu_custom_call.1} parent=1 // pred_check_branch
      %51 = sbr.rel (0) target = $region25
    $region24: #{tpu_custom_call.1} parent=1 // pred_region
      %52 = dma.done [#allocation8], 384
    $region25: #{tpu_custom_call.1} parent=1 // pred_fallthru
      _
    %53 = sfence
    %v54 = vld [vmem:[#allocation6] sm:$0xff]
    %s55 = sadd.s32 0, 8
    %s56 = scalar_lea.vmem [#allocation6], %s55
    %v57 = vld [vmem:[%s56] sm:$0xff]
    %s58 = sadd.s32 0, 16
    %s59 = scalar_lea.vmem [#allocation6], %s58
    %v60 = vld [vmem:[%s59] sm:$0xff]
    %s61 = sadd.s32 0, 24
    %s62 = scalar_lea.vmem [#allocation6], %s61
    %v63 = vld [vmem:[%s62] sm:$0xff]
    %s64 = sadd.s32 0, 32
    %s65 = scalar_lea.vmem [#allocation6], %s64
    %v66 = vld [vmem:[%s65] sm:$0xff]
    %s67 = sadd.s32 0, 40
    %s68 = scalar_lea.vmem [#allocation6], %s67
    %v69 = vld [vmem:[%s68] sm:$0xff]
    %s70 = sld [smem:[#allocation2]]
    %v71 = vstv %s70
    %v72 = vmul.f32 %v71, %v54
    %s73 = sld [smem:[#allocation2 + $0x9]]
    %v74 = vstv %s73
    %v75 = vmul.f32 %v74, %v57
    %v76 = vadd.f32 %v72, %v75
    %s77 = sld [smem:[#allocation2 + $0x12]]
    %v78 = vstv %s77
    %v79 = vmul.f32 %v78, %v60
    %v80 = vadd.f32 %v76, %v79
    %s81 = sld [smem:[#allocation2 + $0x1b]]
    %v82 = vstv %s81
    %v83 = vmul.f32 %v82, %v63
    %v84 = vadd.f32 %v80, %v83
    %s85 = sld [smem:[#allocation2 + $0x24]]
    %v86 = vstv %s85
    %v87 = vmul.f32 %v86, %v66
    %v88 = vadd.f32 %v84, %v87
    %s89 = sld [smem:[#allocation2 + $0x2d]]
    %v90 = vstv %s89
    %v91 = vmul.f32 %v90, %v69
    %v92 = vadd.f32 %v88, %v91
    %v93 = vmul.f32 %v92, 0.015625
    %s94 = sld [smem:[#allocation2 + $0x1]]
    %v95 = vstv %s94
    %v96 = vmul.f32 %v95, %v54
    %s97 = sld [smem:[#allocation2 + $0xa]]
    %v98 = vstv %s97
    %v99 = vmul.f32 %v98, %v57
    %v100 = vadd.f32 %v96, %v99
    %s101 = sld [smem:[#allocation2 + $0x13]]
    %v102 = vstv %s101
    %v103 = vmul.f32 %v102, %v60
    %v104 = vadd.f32 %v100, %v103
    %s105 = sld [smem:[#allocation2 + $0x1c]]
    %v106 = vstv %s105
    %v107 = vmul.f32 %v106, %v63
    %v108 = vadd.f32 %v104, %v107
    %s109 = sld [smem:[#allocation2 + $0x25]]
    %v110 = vstv %s109
    %v111 = vmul.f32 %v110, %v66
    %v112 = vadd.f32 %v108, %v111
    %s113 = sld [smem:[#allocation2 + $0x2e]]
    %v114 = vstv %s113
    %v115 = vmul.f32 %v114, %v69
    %v116 = vadd.f32 %v112, %v115
    %v117 = vmul.f32 %v116, 0.015625
    %s118 = sld [smem:[#allocation2 + $0x2]]
    %v119 = vstv %s118
    %v120 = vmul.f32 %v119, %v54
    %s121 = sld [smem:[#allocation2 + $0xb]]
    %v122 = vstv %s121
    %v123 = vmul.f32 %v122, %v57
    %v124 = vadd.f32 %v120, %v123
    %s125 = sld [smem:[#allocation2 + $0x14]]
    %v126 = vstv %s125
    %v127 = vmul.f32 %v126, %v60
    %v128 = vadd.f32 %v124, %v127
    %s129 = sld [smem:[#allocation2 + $0x1d]]
    %v130 = vstv %s129
    %v131 = vmul.f32 %v130, %v63
    %v132 = vadd.f32 %v128, %v131
    %s133 = sld [smem:[#allocation2 + $0x26]]
    %v134 = vstv %s133
    %v135 = vmul.f32 %v134, %v66
    %v136 = vadd.f32 %v132, %v135
    %s137 = sld [smem:[#allocation2 + $0x2f]]
    %v138 = vstv %s137
    %v139 = vmul.f32 %v138, %v69
    %v140 = vadd.f32 %v136, %v139
    %v141 = vmul.f32 %v140, 0.015625
    %s142 = sld [smem:[#allocation2 + $0x3]]
    %v143 = vstv %s142
    %v144 = vmul.f32 %v143, %v54
    %s145 = sld [smem:[#allocation2 + $0xc]]
    %v146 = vstv %s145
    %v147 = vmul.f32 %v146, %v57
    %v148 = vadd.f32 %v144, %v147
    %s149 = sld [smem:[#allocation2 + $0x15]]
    %v150 = vstv %s149
    %v151 = vmul.f32 %v150, %v60
    %v152 = vadd.f32 %v148, %v151
    %s153 = sld [smem:[#allocation2 + $0x1e]]
    %v154 = vstv %s153
    %v155 = vmul.f32 %v154, %v63
    %v156 = vadd.f32 %v152, %v155
    %s157 = sld [smem:[#allocation2 + $0x27]]
    %v158 = vstv %s157
    %v159 = vmul.f32 %v158, %v66
    %v160 = vadd.f32 %v156, %v159
    %s161 = sld [smem:[#allocation2 + $0x30]]
    %v162 = vstv %s161
    %v163 = vmul.f32 %v162, %v69
    %v164 = vadd.f32 %v160, %v163
    %v165 = vmul.f32 %v164, 0.015625
    %s166 = sld [smem:[#allocation2 + $0x4]]
    %v167 = vstv %s166
    %v168 = vmul.f32 %v167, %v54
    %s169 = sld [smem:[#allocation2 + $0xd]]
    %v170 = vstv %s169
    %v171 = vmul.f32 %v170, %v57
    %v172 = vadd.f32 %v168, %v171
    %s173 = sld [smem:[#allocation2 + $0x16]]
    %v174 = vstv %s173
    %v175 = vmul.f32 %v174, %v60
    %v176 = vadd.f32 %v172, %v175
    %s177 = sld [smem:[#allocation2 + $0x1f]]
    %v178 = vstv %s177
    %v179 = vmul.f32 %v178, %v63
    %v180 = vadd.f32 %v176, %v179
    %s181 = sld [smem:[#allocation2 + $0x28]]
    %v182 = vstv %s181
    %v183 = vmul.f32 %v182, %v66
    %v184 = vadd.f32 %v180, %v183
    %s185 = sld [smem:[#allocation2 + $0x31]]
    %v186 = vstv %s185
    %v187 = vmul.f32 %v186, %v69
    %v188 = vadd.f32 %v184, %v187
    %v189 = vmul.f32 %v188, 0.015625
    %s190 = sld [smem:[#allocation2 + $0x5]]
    %v191 = vstv %s190
    %v192 = vmul.f32 %v191, %v54
    %s193 = sld [smem:[#allocation2 + $0xe]]
    %v194 = vstv %s193
    %v195 = vmul.f32 %v194, %v57
    %v196 = vadd.f32 %v192, %v195
    %s197 = sld [smem:[#allocation2 + $0x17]]
    %v198 = vstv %s197
    %v199 = vmul.f32 %v198, %v60
    %v200 = vadd.f32 %v196, %v199
    %s201 = sld [smem:[#allocation2 + $0x20]]
    %v202 = vstv %s201
    %v203 = vmul.f32 %v202, %v63
    %v204 = vadd.f32 %v200, %v203
    %s205 = sld [smem:[#allocation2 + $0x29]]
    %v206 = vstv %s205
    %v207 = vmul.f32 %v206, %v66
    %v208 = vadd.f32 %v204, %v207
    %s209 = sld [smem:[#allocation2 + $0x32]]
    %v210 = vstv %s209
    %v211 = vmul.f32 %v210, %v69
    %v212 = vadd.f32 %v208, %v211
    %v213 = vmul.f32 %v212, 0.015625
    %s214 = sld [smem:[#allocation2 + $0x6]]
    %v215 = vstv %s214
    %v216 = vmul.f32 %v215, %v54
    %s217 = sld [smem:[#allocation2 + $0xf]]
    %v218 = vstv %s217
    %v219 = vmul.f32 %v218, %v57
    %v220 = vadd.f32 %v216, %v219
    %s221 = sld [smem:[#allocation2 + $0x18]]
    %v222 = vstv %s221
    %v223 = vmul.f32 %v222, %v60
    %v224 = vadd.f32 %v220, %v223
    %s225 = sld [smem:[#allocation2 + $0x21]]
    %v226 = vstv %s225
    %v227 = vmul.f32 %v226, %v63
    %v228 = vadd.f32 %v224, %v227
    %s229 = sld [smem:[#allocation2 + $0x2a]]
    %v230 = vstv %s229
    %v231 = vmul.f32 %v230, %v66
    %v232 = vadd.f32 %v228, %v231
    %s233 = sld [smem:[#allocation2 + $0x33]]
    %v234 = vstv %s233
    %v235 = vmul.f32 %v234, %v69
    %v236 = vadd.f32 %v232, %v235
    %v237 = vmul.f32 %v236, 0.015625
    %s238 = sld [smem:[#allocation2 + $0x7]]
    %v239 = vstv %s238
    %v240 = vmul.f32 %v239, %v54
    %s241 = sld [smem:[#allocation2 + $0x10]]
    %v242 = vstv %s241
    %v243 = vmul.f32 %v242, %v57
    %v244 = vadd.f32 %v240, %v243
    %s245 = sld [smem:[#allocation2 + $0x19]]
    %v246 = vstv %s245
    %v247 = vmul.f32 %v246, %v60
    %v248 = vadd.f32 %v244, %v247
    %s249 = sld [smem:[#allocation2 + $0x22]]
    %v250 = vstv %s249
    %v251 = vmul.f32 %v250, %v63
    %v252 = vadd.f32 %v248, %v251
    %s253 = sld [smem:[#allocation2 + $0x2b]]
    %v254 = vstv %s253
    %v255 = vmul.f32 %v254, %v66
    %v256 = vadd.f32 %v252, %v255
    %s257 = sld [smem:[#allocation2 + $0x34]]
    %v258 = vstv %s257
    %v259 = vmul.f32 %v258, %v69
    %v260 = vadd.f32 %v256, %v259
    %v261 = vmul.f32 %v260, 0.015625
    %s262 = sld [smem:[#allocation2 + $0x8]]
    %v263 = vstv %s262
    %v264 = vmul.f32 %v263, %v54
    %s265 = sld [smem:[#allocation2 + $0x11]]
    %v266 = vstv %s265
    %v267 = vmul.f32 %v266, %v57
    %v268 = vadd.f32 %v264, %v267
    %s269 = sld [smem:[#allocation2 + $0x1a]]
    %v270 = vstv %s269
    %v271 = vmul.f32 %v270, %v60
    %v272 = vadd.f32 %v268, %v271
    %s273 = sld [smem:[#allocation2 + $0x23]]
    %v274 = vstv %s273
    %v275 = vmul.f32 %v274, %v63
    %v276 = vadd.f32 %v272, %v275
    %s277 = sld [smem:[#allocation2 + $0x2c]]
    %v278 = vstv %s277
    %v279 = vmul.f32 %v278, %v66
    %v280 = vadd.f32 %v276, %v279
    %s281 = sld [smem:[#allocation2 + $0x35]]
    %v282 = vstv %s281
    %v283 = vmul.f32 %v282, %v69
    %v284 = vadd.f32 %v280, %v283
    %v285 = vmul.f32 %v284, 0.015625
    %v286 = vmul.f32 %v93, %v93
    %v287 = vmul.f32 %v117, %v165
    %v288 = vadd.f32 %v286, %v287
    %v289 = vmul.f32 %v141, %v237
    %v290 = vadd.f32 %v288, %v289
    %v291 = vmul.f32 %v93, %v117
    %v292 = vmul.f32 %v117, %v189
    %v293 = vadd.f32 %v291, %v292
    %v294 = vmul.f32 %v141, %v261
    %v295 = vadd.f32 %v293, %v294
    %v296 = vmul.f32 %v93, %v141
    %v297 = vmul.f32 %v117, %v213
    %v298 = vadd.f32 %v296, %v297
    %v299 = vmul.f32 %v141, %v285
    %v300 = vadd.f32 %v298, %v299
    %v301 = vmul.f32 %v165, %v93
    %v302 = vmul.f32 %v189, %v165
    %v303 = vadd.f32 %v301, %v302
    %v304 = vmul.f32 %v213, %v237
    %v305 = vadd.f32 %v303, %v304
    %v306 = vmul.f32 %v189, %v189
    %v307 = vadd.f32 %v287, %v306
    %v308 = vmul.f32 %v213, %v261
    %v309 = vadd.f32 %v307, %v308
    %v310 = vmul.f32 %v165, %v141
    %v311 = vmul.f32 %v189, %v213
    %v312 = vadd.f32 %v310, %v311
    %v313 = vmul.f32 %v213, %v285
    %v314 = vadd.f32 %v312, %v313
    %v315 = vmul.f32 %v237, %v93
    %v316 = vmul.f32 %v261, %v165
    %v317 = vadd.f32 %v315, %v316
    %v318 = vmul.f32 %v285, %v237
    %v319 = vadd.f32 %v317, %v318
    %v320 = vmul.f32 %v237, %v117
    %v321 = vmul.f32 %v261, %v189
    %v322 = vadd.f32 %v320, %v321
    %v323 = vmul.f32 %v285, %v261
    %v324 = vadd.f32 %v322, %v323
    %v325 = vadd.f32 %v289, %v308
    %v326 = vmul.f32 %v285, %v285
    %v327 = vadd.f32 %v325, %v326
    %v328 = vmul.f32 %v93, 0.16666667
    %v329 = vmul.f32 %v290, 0.041666668
    %v330 = vadd.f32 %v328, %v329
    %v331 = vmul.f32 %v117, 0.16666667
    %v332 = vmul.f32 %v295, 0.041666668
    %v333 = vadd.f32 %v331, %v332
    %v334 = vmul.f32 %v141, 0.16666667
    %v335 = vmul.f32 %v300, 0.041666668
    %v336 = vadd.f32 %v334, %v335
    %v337 = vmul.f32 %v165, 0.16666667
    %v338 = vmul.f32 %v305, 0.041666668
    %v339 = vadd.f32 %v337, %v338
    %v340 = vmul.f32 %v189, 0.16666667
    %v341 = vmul.f32 %v309, 0.041666668
    %v342 = vadd.f32 %v340, %v341
    %v343 = vmul.f32 %v213, 0.16666667
    %v344 = vmul.f32 %v314, 0.041666668
    %v345 = vadd.f32 %v343, %v344
    %v346 = vmul.f32 %v237, 0.16666667
    %v347 = vmul.f32 %v319, 0.041666668
    %v348 = vadd.f32 %v346, %v347
    %v349 = vmul.f32 %v261, 0.16666667
    %v350 = vmul.f32 %v324, 0.041666668
    %v351 = vadd.f32 %v349, %v350
    %v352 = vmul.f32 %v285, 0.16666667
    %v353 = vmul.f32 %v327, 0.041666668
    %v354 = vadd.f32 %v352, %v353
    %v355 = vmul.f32 %v290, %v330
    %v356 = vmul.f32 %v295, %v339
    %v357 = vadd.f32 %v355, %v356
    %v358 = vmul.f32 %v300, %v348
    %v359 = vadd.f32 %v357, %v358
    %v360 = vmul.f32 %v290, %v333
    %v361 = vmul.f32 %v295, %v342
    %v362 = vadd.f32 %v360, %v361
    %v363 = vmul.f32 %v300, %v351
    %v364 = vadd.f32 %v362, %v363
    %v365 = vmul.f32 %v290, %v336
    %v366 = vmul.f32 %v295, %v345
    %v367 = vadd.f32 %v365, %v366
    %v368 = vmul.f32 %v300, %v354
    %v369 = vadd.f32 %v367, %v368
    %v370 = vmul.f32 %v305, %v330
    %v371 = vmul.f32 %v309, %v339
    %v372 = vadd.f32 %v370, %v371
    %v373 = vmul.f32 %v314, %v348
    %v374 = vadd.f32 %v372, %v373
    %v375 = vmul.f32 %v305, %v333
    %v376 = vmul.f32 %v309, %v342
    %v377 = vadd.f32 %v375, %v376
    %v378 = vmul.f32 %v314, %v351
    %v379 = vadd.f32 %v377, %v378
    %v380 = vmul.f32 %v305, %v336
    %v381 = vmul.f32 %v309, %v345
    %v382 = vadd.f32 %v380, %v381
    %v383 = vmul.f32 %v314, %v354
    %v384 = vadd.f32 %v382, %v383
    %v385 = vmul.f32 %v319, %v330
    %v386 = vmul.f32 %v324, %v339
    %v387 = vadd.f32 %v385, %v386
    %v388 = vmul.f32 %v327, %v348
    %v389 = vadd.f32 %v387, %v388
    %v390 = vmul.f32 %v319, %v333
    %v391 = vmul.f32 %v324, %v342
    %v392 = vadd.f32 %v390, %v391
    %v393 = vmul.f32 %v327, %v351
    %v394 = vadd.f32 %v392, %v393
    %v395 = vmul.f32 %v319, %v336
    %v396 = vmul.f32 %v324, %v345
    %v397 = vadd.f32 %v395, %v396
    %v398 = vmul.f32 %v327, %v354
    %v399 = vadd.f32 %v397, %v398
    %v400 = vmul.f32 %v290, 0.5
    %v401 = vadd.f32 %v93, %v400
    %v402 = vadd.f32 %v401, %v359
    %v403 = vmul.f32 %v295, 0.5
    %v404 = vadd.f32 %v117, %v403
    %v405 = vadd.f32 %v404, %v364
    %v406 = vmul.f32 %v300, 0.5
    %v407 = vadd.f32 %v141, %v406
    %v408 = vadd.f32 %v407, %v369
    %v409 = vmul.f32 %v305, 0.5
    %v410 = vadd.f32 %v165, %v409
    %v411 = vadd.f32 %v410, %v374
    %v412 = vmul.f32 %v309, 0.5
    %v413 = vadd.f32 %v189, %v412
    %v414 = vadd.f32 %v413, %v379
    %v415 = vmul.f32 %v314, 0.5
    %v416 = vadd.f32 %v213, %v415
    %v417 = vadd.f32 %v416, %v384
    %v418 = vmul.f32 %v319, 0.5
    %v419 = vadd.f32 %v237, %v418
    %v420 = vadd.f32 %v419, %v389
    %v421 = vmul.f32 %v324, 0.5
    %v422 = vadd.f32 %v261, %v421
    %v423 = vadd.f32 %v422, %v394
    %v424 = vmul.f32 %v327, 0.5
    %v425 = vadd.f32 %v285, %v424
    %v426 = vadd.f32 %v425, %v399
    %v427 = vmul.f32 %v402, %v402
    %v428 = vmul.f32 %v405, %v411
    %v429 = vadd.f32 %v427, %v428
    %v430 = vmul.f32 %v408, %v420
    %v431 = vadd.f32 %v429, %v430
    %v432 = vmul.f32 %v402, %v405
    %v433 = vmul.f32 %v405, %v414
    %v434 = vadd.f32 %v432, %v433
    %v435 = vmul.f32 %v408, %v423
    %v436 = vadd.f32 %v434, %v435
    %v437 = vmul.f32 %v402, %v408
    %v438 = vmul.f32 %v405, %v417
    %v439 = vadd.f32 %v437, %v438
    %v440 = vmul.f32 %v408, %v426
    %v441 = vadd.f32 %v439, %v440
    %v442 = vmul.f32 %v411, %v402
    %v443 = vmul.f32 %v414, %v411
    %v444 = vadd.f32 %v442, %v443
    %v445 = vmul.f32 %v417, %v420
    %v446 = vadd.f32 %v444, %v445
    %v447 = vmul.f32 %v414, %v414
    %v448 = vadd.f32 %v428, %v447
    %v449 = vmul.f32 %v417, %v423
    %v450 = vadd.f32 %v448, %v449
    %v451 = vmul.f32 %v411, %v408
    %v452 = vmul.f32 %v414, %v417
    %v453 = vadd.f32 %v451, %v452
    %v454 = vmul.f32 %v417, %v426
    %v455 = vadd.f32 %v453, %v454
    %v456 = vmul.f32 %v420, %v402
    %v457 = vmul.f32 %v423, %v411
    %v458 = vadd.f32 %v456, %v457
    %v459 = vmul.f32 %v426, %v420
    %v460 = vadd.f32 %v458, %v459
    %v461 = vmul.f32 %v420, %v405
    %v462 = vmul.f32 %v423, %v414
    %v463 = vadd.f32 %v461, %v462
    %v464 = vmul.f32 %v426, %v423
    %v465 = vadd.f32 %v463, %v464
    %v466 = vadd.f32 %v430, %v449
    %v467 = vmul.f32 %v426, %v426
    %v468 = vadd.f32 %v466, %v467
    %v469 = vmul.f32 %v402, 2.0
    %v470 = vadd.f32 %v469, %v431
    %v471 = vmul.f32 %v405, 2.0
    %v472 = vadd.f32 %v471, %v436
    %v473 = vmul.f32 %v408, 2.0
    %v474 = vadd.f32 %v473, %v441
    %v475 = vmul.f32 %v411, 2.0
    %v476 = vadd.f32 %v475, %v446
    %v477 = vmul.f32 %v414, 2.0
    %v478 = vadd.f32 %v477, %v450
    %v479 = vmul.f32 %v417, 2.0
    %v480 = vadd.f32 %v479, %v455
    %v481 = vmul.f32 %v420, 2.0
    %v482 = vadd.f32 %v481, %v460
    %v483 = vmul.f32 %v423, 2.0
    %v484 = vadd.f32 %v483, %v465
    %v485 = vmul.f32 %v426, 2.0
    %v486 = vadd.f32 %v485, %v468
    %v487 = vmul.f32 %v470, %v470
    %v488 = vmul.f32 %v472, %v476
    %v489 = vadd.f32 %v487, %v488
    %v490 = vmul.f32 %v474, %v482
    %v491 = vadd.f32 %v489, %v490
    %v492 = vmul.f32 %v470, %v472
    %v493 = vmul.f32 %v472, %v478
    %v494 = vadd.f32 %v492, %v493
    %v495 = vmul.f32 %v474, %v484
    %v496 = vadd.f32 %v494, %v495
    %v497 = vmul.f32 %v470, %v474
    %v498 = vmul.f32 %v472, %v480
    %v499 = vadd.f32 %v497, %v498
    %v500 = vmul.f32 %v474, %v486
    %v501 = vadd.f32 %v499, %v500
    %v502 = vmul.f32 %v476, %v470
    %v503 = vmul.f32 %v478, %v476
    %v504 = vadd.f32 %v502, %v503
    %v505 = vmul.f32 %v480, %v482
    %v506 = vadd.f32 %v504, %v505
    %v507 = vmul.f32 %v478, %v478
    %v508 = vadd.f32 %v488, %v507
    %v509 = vmul.f32 %v480, %v484
    %v510 = vadd.f32 %v508, %v509
    %v511 = vmul.f32 %v476, %v474
    %v512 = vmul.f32 %v478, %v480
    %v513 = vadd.f32 %v511, %v512
    %v514 = vmul.f32 %v480, %v486
    %v515 = vadd.f32 %v513, %v514
    %v516 = vmul.f32 %v482, %v470
    %v517 = vmul.f32 %v484, %v476
    %v518 = vadd.f32 %v516, %v517
    %v519 = vmul.f32 %v486, %v482
    %v520 = vadd.f32 %v518, %v519
    %v521 = vmul.f32 %v482, %v472
    %v522 = vmul.f32 %v484, %v478
    %v523 = vadd.f32 %v521, %v522
    %v524 = vmul.f32 %v486, %v484
    %v525 = vadd.f32 %v523, %v524
    %v526 = vadd.f32 %v490, %v509
    %v527 = vmul.f32 %v486, %v486
    %v528 = vadd.f32 %v526, %v527
    %v529 = vmul.f32 %v470, 2.0
    %v530 = vadd.f32 %v529, %v491
    %v531 = vmul.f32 %v472, 2.0
    %v532 = vadd.f32 %v531, %v496
    %v533 = vmul.f32 %v474, 2.0
    %v534 = vadd.f32 %v533, %v501
    %v535 = vmul.f32 %v476, 2.0
    %v536 = vadd.f32 %v535, %v506
    %v537 = vmul.f32 %v478, 2.0
    %v538 = vadd.f32 %v537, %v510
    %v539 = vmul.f32 %v480, 2.0
    %v540 = vadd.f32 %v539, %v515
    %v541 = vmul.f32 %v482, 2.0
    %v542 = vadd.f32 %v541, %v520
    %v543 = vmul.f32 %v484, 2.0
    %v544 = vadd.f32 %v543, %v525
    %v545 = vmul.f32 %v486, 2.0
    %v546 = vadd.f32 %v545, %v528
    %v547 = vmul.f32 %v530, %v530
    %v548 = vmul.f32 %v532, %v536
    %v549 = vadd.f32 %v547, %v548
    %v550 = vmul.f32 %v534, %v542
    %v551 = vadd.f32 %v549, %v550
    %v552 = vmul.f32 %v530, %v532
    %v553 = vmul.f32 %v532, %v538
    %v554 = vadd.f32 %v552, %v553
    %v555 = vmul.f32 %v534, %v544
    %v556 = vadd.f32 %v554, %v555
    %v557 = vmul.f32 %v530, %v534
    %v558 = vmul.f32 %v532, %v540
    %v559 = vadd.f32 %v557, %v558
    %v560 = vmul.f32 %v534, %v546
    %v561 = vadd.f32 %v559, %v560
    %v562 = vmul.f32 %v536, %v530
    %v563 = vmul.f32 %v538, %v536
    %v564 = vadd.f32 %v562, %v563
    %v565 = vmul.f32 %v540, %v542
    %v566 = vadd.f32 %v564, %v565
    %v567 = vmul.f32 %v538, %v538
    %v568 = vadd.f32 %v548, %v567
    %v569 = vmul.f32 %v540, %v544
    %v570 = vadd.f32 %v568, %v569
    %v571 = vmul.f32 %v536, %v534
    %v572 = vmul.f32 %v538, %v540
    %v573 = vadd.f32 %v571, %v572
    %v574 = vmul.f32 %v540, %v546
    %v575 = vadd.f32 %v573, %v574
    %v576 = vmul.f32 %v542, %v530
    %v577 = vmul.f32 %v544, %v536
    %v578 = vadd.f32 %v576, %v577
    %v579 = vmul.f32 %v546, %v542
    %v580 = vadd.f32 %v578, %v579
    %v581 = vmul.f32 %v542, %v532
    %v582 = vmul.f32 %v544, %v538
    %v583 = vadd.f32 %v581, %v582
    %v584 = vmul.f32 %v546, %v544
    %v585 = vadd.f32 %v583, %v584
    %v586 = vadd.f32 %v550, %v569
    %v587 = vmul.f32 %v546, %v546
    %v588 = vadd.f32 %v586, %v587
    %v589 = vmul.f32 %v530, 2.0
    %v590 = vadd.f32 %v589, %v551
    %v591 = vmul.f32 %v532, 2.0
    %v592 = vadd.f32 %v591, %v556
    %v593 = vmul.f32 %v534, 2.0
    %v594 = vadd.f32 %v593, %v561
    %v595 = vmul.f32 %v536, 2.0
    %v596 = vadd.f32 %v595, %v566
    %v597 = vmul.f32 %v538, 2.0
    %v598 = vadd.f32 %v597, %v570
    %v599 = vmul.f32 %v540, 2.0
    %v600 = vadd.f32 %v599, %v575
    %v601 = vmul.f32 %v542, 2.0
    %v602 = vadd.f32 %v601, %v580
    %v603 = vmul.f32 %v544, 2.0
    %v604 = vadd.f32 %v603, %v585
    %v605 = vmul.f32 %v546, 2.0
    %v606 = vadd.f32 %v605, %v588
    %v607 = vmul.f32 %v590, %v590
    %v608 = vmul.f32 %v592, %v596
    %v609 = vadd.f32 %v607, %v608
    %v610 = vmul.f32 %v594, %v602
    %v611 = vadd.f32 %v609, %v610
    %v612 = vmul.f32 %v590, %v592
    %v613 = vmul.f32 %v592, %v598
    %v614 = vadd.f32 %v612, %v613
    %v615 = vmul.f32 %v594, %v604
    %v616 = vadd.f32 %v614, %v615
    %v617 = vmul.f32 %v590, %v594
    %v618 = vmul.f32 %v592, %v600
    %v619 = vadd.f32 %v617, %v618
    %v620 = vmul.f32 %v594, %v606
    %v621 = vadd.f32 %v619, %v620
    %v622 = vmul.f32 %v596, %v590
    %v623 = vmul.f32 %v598, %v596
    %v624 = vadd.f32 %v622, %v623
    %v625 = vmul.f32 %v600, %v602
    %v626 = vadd.f32 %v624, %v625
    %v627 = vmul.f32 %v598, %v598
    %v628 = vadd.f32 %v608, %v627
    %v629 = vmul.f32 %v600, %v604
    %v630 = vadd.f32 %v628, %v629
    %v631 = vmul.f32 %v596, %v594
    %v632 = vmul.f32 %v598, %v600
    %v633 = vadd.f32 %v631, %v632
    %v634 = vmul.f32 %v600, %v606
    %v635 = vadd.f32 %v633, %v634
    %v636 = vmul.f32 %v602, %v590
    %v637 = vmul.f32 %v604, %v596
    %v638 = vadd.f32 %v636, %v637
    %v639 = vmul.f32 %v606, %v602
    %v640 = vadd.f32 %v638, %v639
    %v641 = vmul.f32 %v602, %v592
    %v642 = vmul.f32 %v604, %v598
    %v643 = vadd.f32 %v641, %v642
    %v644 = vmul.f32 %v606, %v604
    %v645 = vadd.f32 %v643, %v644
    %v646 = vadd.f32 %v610, %v629
    %v647 = vmul.f32 %v606, %v606
    %v648 = vadd.f32 %v646, %v647
    %v649 = vmul.f32 %v590, 2.0
    %v650 = vadd.f32 %v649, %v611
    %v651 = vmul.f32 %v592, 2.0
    %v652 = vadd.f32 %v651, %v616
    %v653 = vmul.f32 %v594, 2.0
    %v654 = vadd.f32 %v653, %v621
    %v655 = vmul.f32 %v596, 2.0
    %v656 = vadd.f32 %v655, %v626
    %v657 = vmul.f32 %v598, 2.0
    %v658 = vadd.f32 %v657, %v630
    %v659 = vmul.f32 %v600, 2.0
    %v660 = vadd.f32 %v659, %v635
    %v661 = vmul.f32 %v602, 2.0
    %v662 = vadd.f32 %v661, %v640
    %v663 = vmul.f32 %v604, 2.0
    %v664 = vadd.f32 %v663, %v645
    %v665 = vmul.f32 %v606, 2.0
    %v666 = vadd.f32 %v665, %v648
    %v667 = vmul.f32 %v650, %v650
    %v668 = vmul.f32 %v652, %v656
    %v669 = vadd.f32 %v667, %v668
    %v670 = vmul.f32 %v654, %v662
    %v671 = vadd.f32 %v669, %v670
    %v672 = vmul.f32 %v650, %v652
    %v673 = vmul.f32 %v652, %v658
    %v674 = vadd.f32 %v672, %v673
    %v675 = vmul.f32 %v654, %v664
    %v676 = vadd.f32 %v674, %v675
    %v677 = vmul.f32 %v650, %v654
    %v678 = vmul.f32 %v652, %v660
    %v679 = vadd.f32 %v677, %v678
    %v680 = vmul.f32 %v654, %v666
    %v681 = vadd.f32 %v679, %v680
    %v682 = vmul.f32 %v656, %v650
    %v683 = vmul.f32 %v658, %v656
    %v684 = vadd.f32 %v682, %v683
    %v685 = vmul.f32 %v660, %v662
    %v686 = vadd.f32 %v684, %v685
    %v687 = vmul.f32 %v658, %v658
    %v688 = vadd.f32 %v668, %v687
    %v689 = vmul.f32 %v660, %v664
    %v690 = vadd.f32 %v688, %v689
    %v691 = vmul.f32 %v656, %v654
    %v692 = vmul.f32 %v658, %v660
    %v693 = vadd.f32 %v691, %v692
    %v694 = vmul.f32 %v660, %v666
    %v695 = vadd.f32 %v693, %v694
    %v696 = vmul.f32 %v662, %v650
    %v697 = vmul.f32 %v664, %v656
    %v698 = vadd.f32 %v696, %v697
    %v699 = vmul.f32 %v666, %v662
    %v700 = vadd.f32 %v698, %v699
    %v701 = vmul.f32 %v662, %v652
    %v702 = vmul.f32 %v664, %v658
    %v703 = vadd.f32 %v701, %v702
    %v704 = vmul.f32 %v666, %v664
    %v705 = vadd.f32 %v703, %v704
    %v706 = vadd.f32 %v670, %v689
    %v707 = vmul.f32 %v666, %v666
    %v708 = vadd.f32 %v706, %v707
    %v709 = vmul.f32 %v650, 2.0
    %v710 = vadd.f32 %v709, %v671
    %v711 = vmul.f32 %v652, 2.0
    %v712 = vadd.f32 %v711, %v676
    %v713 = vmul.f32 %v654, 2.0
    %v714 = vadd.f32 %v713, %v681
    %v715 = vmul.f32 %v656, 2.0
    %v716 = vadd.f32 %v715, %v686
    %v717 = vmul.f32 %v658, 2.0
    %v718 = vadd.f32 %v717, %v690
    %v719 = vmul.f32 %v660, 2.0
    %v720 = vadd.f32 %v719, %v695
    %v721 = vmul.f32 %v662, 2.0
    %v722 = vadd.f32 %v721, %v700
    %v723 = vmul.f32 %v664, 2.0
    %v724 = vadd.f32 %v723, %v705
    %v725 = vmul.f32 %v666, 2.0
    %v726 = vadd.f32 %v725, %v708
    %v727 = vmul.f32 %v710, %v710
    %v728 = vmul.f32 %v712, %v716
    %v729 = vadd.f32 %v727, %v728
    %v730 = vmul.f32 %v714, %v722
    %v731 = vadd.f32 %v729, %v730
    %v732 = vmul.f32 %v710, %v712
    %v733 = vmul.f32 %v712, %v718
    %v734 = vadd.f32 %v732, %v733
    %v735 = vmul.f32 %v714, %v724
    %v736 = vadd.f32 %v734, %v735
    %v737 = vmul.f32 %v710, %v714
    %v738 = vmul.f32 %v712, %v720
    %v739 = vadd.f32 %v737, %v738
    %v740 = vmul.f32 %v714, %v726
    %v741 = vadd.f32 %v739, %v740
    %v742 = vmul.f32 %v716, %v710
    %v743 = vmul.f32 %v718, %v716
    %v744 = vadd.f32 %v742, %v743
    %v745 = vmul.f32 %v720, %v722
    %v746 = vadd.f32 %v744, %v745
    %v747 = vmul.f32 %v718, %v718
    %v748 = vadd.f32 %v728, %v747
    %v749 = vmul.f32 %v720, %v724
    %v750 = vadd.f32 %v748, %v749
    %v751 = vmul.f32 %v716, %v714
    %v752 = vmul.f32 %v718, %v720
    %v753 = vadd.f32 %v751, %v752
    %v754 = vmul.f32 %v720, %v726
    %v755 = vadd.f32 %v753, %v754
    %v756 = vmul.f32 %v722, %v710
    %v757 = vmul.f32 %v724, %v716
    %v758 = vadd.f32 %v756, %v757
    %v759 = vmul.f32 %v726, %v722
    %v760 = vadd.f32 %v758, %v759
    %v761 = vmul.f32 %v722, %v712
    %v762 = vmul.f32 %v724, %v718
    %v763 = vadd.f32 %v761, %v762
    %v764 = vmul.f32 %v726, %v724
    %v765 = vadd.f32 %v763, %v764
    %v766 = vadd.f32 %v730, %v749
    %v767 = vmul.f32 %v726, %v726
    %v768 = vadd.f32 %v766, %v767
    %v769 = vmul.f32 %v710, 2.0
    %v770 = vadd.f32 %v769, %v731
    %v771 = vmul.f32 %v712, 2.0
    %v772 = vadd.f32 %v771, %v736
    %v773 = vmul.f32 %v714, 2.0
    %v774 = vadd.f32 %v773, %v741
    %v775 = vmul.f32 %v716, 2.0
    %v776 = vadd.f32 %v775, %v746
    %v777 = vmul.f32 %v718, 2.0
    %v778 = vadd.f32 %v777, %v750
    %v779 = vmul.f32 %v720, 2.0
    %v780 = vadd.f32 %v779, %v755
    %v781 = vmul.f32 %v722, 2.0
    %v782 = vadd.f32 %v781, %v760
    %v783 = vmul.f32 %v724, 2.0
    %v784 = vadd.f32 %v783, %v765
    %v785 = vmul.f32 %v726, 2.0
    %v786 = vadd.f32 %v785, %v768
    %v787 = vld [vmem:[#allocation7] sm:$0xff]
    %s788 = scalar_lea.vmem [#allocation7], %s55
    %v789 = vld [vmem:[%s788] sm:$0xff]
    %s790 = scalar_lea.vmem [#allocation7], %s58
    %v791 = vld [vmem:[%s790] sm:$0xff]
    %v792 = vmul.f32 %v770, %v787
    %v793 = vadd.f32 %v787, %v792
    %v794 = vmul.f32 %v772, %v789
    %v795 = vadd.f32 %v793, %v794
    %v796 = vmul.f32 %v774, %v791
    %v797 = vadd.f32 %v795, %v796
    %798 = vst [vmem:[#allocation9] sm:$0xff] %v797
    %v799 = vmul.f32 %v776, %v787
    %v800 = vadd.f32 %v789, %v799
    %v801 = vmul.f32 %v778, %v789
    %v802 = vadd.f32 %v800, %v801
    %v803 = vmul.f32 %v780, %v791
    %v804 = vadd.f32 %v802, %v803
    %s805 = scalar_lea.vmem [#allocation9], %s55
    %806 = vst [vmem:[%s805] sm:$0xff] %v804
    %v807 = vmul.f32 %v782, %v787
    %v808 = vadd.f32 %v791, %v807
    %v809 = vmul.f32 %v784, %v789
    %v810 = vadd.f32 %v808, %v809
    %v811 = vmul.f32 %v786, %v791
    %v812 = vadd.f32 %v810, %v811
    %s813 = scalar_lea.vmem [#allocation9], %s58
    %814 = vst [vmem:[%s813] sm:$0xff] %v812
    // Predicated region
    $region26: #{tpu_custom_call.1} parent=1 // pred_check
      _
    $region27: #{tpu_custom_call.1} parent=1 // pred_check_branch
      %816 = sbr.rel (0) target = $region29
    $region28: #{tpu_custom_call.1} parent=1 // pred_region
      %s818 = ssub.s32 384, 384
      %819 = vsyncadd [#allocation4], %s818
      %s820 = sshll.u32 [#allocation9], 4
      %s821 = int_to_ptr.vmem [resolvable:$true] %s820
      %826 = dma.vmem_to_hbm [thread:$0]  %s821, 384, %s3, [#allocation4], 128, 128, 8
    $region29: #{tpu_custom_call.1} parent=1 // pred_fallthru
      _
    // Predicated region
    $region30: #{tpu_custom_call.1} parent=1 // pred_check
      _
    $region31: #{tpu_custom_call.1} parent=1 // pred_check_branch
      %828 = sbr.rel (0) target = $region33
    $region32: #{tpu_custom_call.1} parent=1 // pred_region
      %829 = dma.done [#allocation4], 384
    $region33: #{tpu_custom_call.1} parent=1 // pred_fallthru
      _
    %830 = vsyncpa [#allocation3], 1
    %831 = vsyncpa [#allocation8], 1
    %832 = vsyncpa [#allocation4], 1
    %833 = vsyncpa [#allocation5], 1

</llo_original>
